<compile_context>
chip_gen: v6e
topology: v6e:2x2x1
jax: 0.10.0
libtpu: 0.0.40
codegen_flags: <defaults>
</compile_context>

<pallas_src>
import functools

import jax
import jax.numpy as jnp
import numpy as np
from jax import lax
from jax.experimental import pallas as pl
from jax.experimental.pallas import tpu as pltpu

MATMUL_DTYPE = jnp.bfloat16      # MXU operand dtype; accumulation is always f32
ACT_DTYPE = jnp.bfloat16         # intermediate activations in HBM
LN_EPS = 1e-5
VMEM_LIMIT = 48 * 1024 * 1024    # > v5e/v6e scoped defaults, < v7x 64 MiB physical


def _round_up(x, m):
    return ((x + m - 1) // m) * m


def _pick_tile(dim, target, align):
    """Largest multiple of `align` that divides `dim` and is <= target; else full dim."""
    if dim <= target:
        return dim
    t = (target // align) * align
    while t >= align:
        if dim % t == 0:
            return t
        t -= align
    return dim


def _mosaic_params(dims):
    return pltpu.CompilerParams(dimension_semantics=dims, vmem_limit_bytes=VMEM_LIMIT)


# ----------------------------- Pallas kernels ------------------------------

def _dense_kernel(x_ref, w_ref, b_ref, o_ref, acc_ref, *, act):
    """acc += x @ w ; last K-step: o = act(acc + b).  K must be the innermost axis."""
    @pl.when(pl.program_id(2) == 0)
    def _init():
        acc_ref[...] = jnp.zeros_like(acc_ref)

    acc_ref[...] += jnp.dot(
        x_ref[...].astype(MATMUL_DTYPE), w_ref[...].astype(MATMUL_DTYPE),
        preferred_element_type=jnp.float32)

    @pl.when(pl.program_id(2) == pl.num_programs(2) - 1)
    def _finish():
        y = acc_ref[...] + b_ref[...].astype(jnp.float32)
        if act == "relu":
            y = jnp.maximum(y, 0.0)
        o_ref[...] = y.astype(o_ref.dtype)


def dense(x2d, w_t, b, act="none", out_dtype=None):
    """y = act(x2d @ w_t + b).  w_t is (K, N) -- already transposed, bf16."""
    M, K = x2d.shape
    N = w_t.shape[1]
    out_dtype = x2d.dtype if out_dtype is None else out_dtype
    tm = _pick_tile(M, 512, 8)
    tn = _pick_tile(N, 1024, 128)
    tk = _pick_tile(K, 512, 128)
    grid = (M // tm, N // tn, K // tk)
    return pl.pallas_call(
        functools.partial(_dense_kernel, act=act),
        out_shape=jax.ShapeDtypeStruct((M, N), out_dtype),
        grid=grid,
        in_specs=[
            pl.BlockSpec((tm, tk), lambda i, j, k: (i, k)),
            pl.BlockSpec((tk, tn), lambda i, j, k: (k, j)),
            pl.BlockSpec((1, tn), lambda i, j, k: (0, j)),
        ],
        out_specs=pl.BlockSpec((tm, tn), lambda i, j, k: (i, j)),
        scratch_shapes=[pltpu.VMEM((tm, tn), jnp.float32)],
        compiler_params=_mosaic_params(("parallel", "parallel", "arbitrary")),
    )(x2d, w_t, b.reshape(1, N))


def _dense_add_ln_kernel(x_ref, w_ref, b_ref, res_ref, g_ref, bt_ref,
                         o_ref, acc_ref, *, eps):
    """acc += x @ w ; last K-step: o = LN(res + acc + b) * g + beta."""
    k = pl.program_id(1)

    @pl.when(k == 0)
    def _init():
        acc_ref[...] = jnp.zeros_like(acc_ref)

    acc_ref[...] += jnp.dot(
        x_ref[...].astype(MATMUL_DTYPE), w_ref[...].astype(MATMUL_DTYPE),
        preferred_element_type=jnp.float32)

    @pl.when(k == pl.num_programs(1) - 1)
    def _finish():
        y = acc_ref[...] + b_ref[...] + res_ref[...].astype(jnp.float32)
        mu = jnp.mean(y, axis=-1, keepdims=True)
        var = jnp.mean((y - mu) ** 2, axis=-1, keepdims=True)
        y = (y - mu) * lax.rsqrt(var + eps)
        o_ref[...] = (y * g_ref[...] + bt_ref[...]).astype(o_ref.dtype)


def dense_add_ln(x2d, w_t, b, res2d, gamma, beta, eps=LN_EPS, out_dtype=None):
    """LayerNorm(res2d + x2d @ w_t + b) * gamma + beta (full-width N tile for the LN)."""
    M, K = x2d.shape
    N = w_t.shape[1]
    out_dtype = x2d.dtype if out_dtype is None else out_dtype
    tm = _pick_tile(M, 256, 8)
    tk = _pick_tile(K, 512, 128)
    grid = (M // tm, K // tk)
    return pl.pallas_call(
        functools.partial(_dense_add_ln_kernel, eps=eps),
        out_shape=jax.ShapeDtypeStruct((M, N), out_dtype),
        grid=grid,
        in_specs=[
            pl.BlockSpec((tm, tk), lambda i, k: (i, k)),
            pl.BlockSpec((tk, N), lambda i, k: (k, 0)),
            pl.BlockSpec((1, N), lambda i, k: (0, 0)),
            pl.BlockSpec((tm, N), lambda i, k: (i, 0)),
            pl.BlockSpec((1, N), lambda i, k: (0, 0)),
            pl.BlockSpec((1, N), lambda i, k: (0, 0)),
        ],
        out_specs=pl.BlockSpec((tm, N), lambda i, k: (i, 0)),
        scratch_shapes=[pltpu.VMEM((tm, N), jnp.float32)],
        compiler_params=_mosaic_params(("parallel", "arbitrary")),
    )(x2d, w_t, b.reshape(1, N), res2d, gamma.reshape(1, N), beta.reshape(1, N))


def _ffn_kernel(x_ref, w1_ref, b1_ref, w2_ref, b2_ref, g_ref, bt_ref,
                o_ref, acc_ref, *, eps):
    """Fused FFN: acc += relu(x @ w1_f + b1_f) @ w2_f ; last FF-step: LN(x + acc + b2)."""
    f = pl.program_id(1)

    @pl.when(f == 0)
    def _init():
        acc_ref[...] = jnp.zeros_like(acc_ref)

    h = jnp.dot(x_ref[...].astype(MATMUL_DTYPE), w1_ref[...].astype(MATMUL_DTYPE),
                preferred_element_type=jnp.float32)
    h = jnp.maximum(h + b1_ref[...], 0.0)
    acc_ref[...] += jnp.dot(h.astype(MATMUL_DTYPE), w2_ref[...].astype(MATMUL_DTYPE),
                            preferred_element_type=jnp.float32)

    @pl.when(f == pl.num_programs(1) - 1)
    def _finish():
        y = acc_ref[...] + b2_ref[...] + x_ref[...].astype(jnp.float32)
        mu = jnp.mean(y, axis=-1, keepdims=True)
        var = jnp.mean((y - mu) ** 2, axis=-1, keepdims=True)
        y = (y - mu) * lax.rsqrt(var + eps)
        o_ref[...] = (y * g_ref[...] + bt_ref[...]).astype(o_ref.dtype)


def ffn_add_ln(x2d, w1_t, b1, w2_t, b2, gamma, beta, eps=LN_EPS, out_dtype=None):
    """LayerNorm(x + relu(x @ w1 + b1) @ w2 + b2) * gamma + beta; reduction over dim_ff.
    The (B*S, dim_ff) intermediate never touches HBM."""
    M, D = x2d.shape
    FF = w1_t.shape[1]
    out_dtype = x2d.dtype if out_dtype is None else out_dtype
    tm = _pick_tile(M, 256, 8)
    tf = _pick_tile(FF, 512, 128)
    grid = (M // tm, FF // tf)
    return pl.pallas_call(
        functools.partial(_ffn_kernel, eps=eps),
        out_shape=jax.ShapeDtypeStruct((M, D), out_dtype),
        grid=grid,
        in_specs=[
            pl.BlockSpec((tm, D), lambda i, f: (i, 0)),    # x (resident across FF steps)
            pl.BlockSpec((D, tf), lambda i, f: (0, f)),    # w1 chunk
            pl.BlockSpec((1, tf), lambda i, f: (0, f)),    # b1 chunk
            pl.BlockSpec((tf, D), lambda i, f: (f, 0)),    # w2 chunk
            pl.BlockSpec((1, D), lambda i, f: (0, 0)),     # b2
            pl.BlockSpec((1, D), lambda i, f: (0, 0)),     # gamma
            pl.BlockSpec((1, D), lambda i, f: (0, 0)),     # beta
        ],
        out_specs=pl.BlockSpec((tm, D), lambda i, f: (i, 0)),
        scratch_shapes=[pltpu.VMEM((tm, D), jnp.float32)],
        compiler_params=_mosaic_params(("parallel", "arbitrary")),
    )(x2d, w1_t, b1.reshape(1, FF), w2_t, b2.reshape(1, D),
      gamma.reshape(1, D), beta.reshape(1, D))


def _mha_kernel(q_ref, k_ref, v_ref, o_ref, m_sc, l_sc, acc_sc):
    """Flash-style attention for one (batch*head, q-block); online softmax over kv blocks.

    grid = (B*H, S/tq, S/tkv); the kv axis is innermost (reduction).
    1/sqrt(dh) is already folded into q via the in_proj weights.
    Unmasked, full-sequence attention (matches the reference module: no mask).
    """
    kv = pl.program_id(2)

    @pl.when(kv == 0)
    def _init():
        m_sc[...] = jnp.full_like(m_sc, -jnp.inf)
        l_sc[...] = jnp.zeros_like(l_sc)
        acc_sc[...] = jnp.zeros_like(acc_sc)

    q = q_ref[0]                                   # (tq, dh)  bf16
    k = k_ref[0]                                   # (tkv, dh) bf16
    v = v_ref[0]                                   # (tkv, dh) bf16
    # q @ k^T without materializing a transpose (contract dim 1 of both), bf16 MXU, f32 acc.
    s = lax.dot_general(q, k, (((1,), (1,)), ((), ())),
                        preferred_element_type=jnp.float32)        # (tq, tkv)
    m_prev = m_sc[...]
    m_new = jnp.maximum(m_prev, jnp.max(s, axis=-1, keepdims=True))
    alpha = jnp.exp(m_prev - m_new)
    p = jnp.exp(s - m_new)
    l_sc[...] = alpha * l_sc[...] + jnp.sum(p, axis=-1, keepdims=True)
    acc_sc[...] = alpha * acc_sc[...] + jnp.dot(
        p.astype(MATMUL_DTYPE), v, preferred_element_type=jnp.float32)
    m_sc[...] = m_new

    @pl.when(kv == pl.num_programs(2) - 1)
    def _finish():
        out = acc_sc[...] * pl.reciprocal(l_sc[...], approx=True)   # EUP, ~free
        o_ref[...] = out[None].astype(o_ref.dtype)


def mha(q, k, v):
    """q, k, v: (B*H, S, dh) -> (B*H, S, dh)."""
    BH, S, dh = q.shape
    tq = _pick_tile(S, 256, 8)
    tkv = _pick_tile(S, 512, 8)
    grid = (BH, S // tq, S // tkv)
    return pl.pallas_call(
        _mha_kernel,
        out_shape=jax.ShapeDtypeStruct((BH, S, dh), q.dtype),
        grid=grid,
        in_specs=[
            pl.BlockSpec((1, tq, dh), lambda b, i, j: (b, i, 0)),
            pl.BlockSpec((1, tkv, dh), lambda b, i, j: (b, j, 0)),
            pl.BlockSpec((1, tkv, dh), lambda b, i, j: (b, j, 0)),
        ],
        out_specs=pl.BlockSpec((1, tq, dh), lambda b, i, j: (b, i, 0)),
        scratch_shapes=[pltpu.VMEM((tq, 1), jnp.float32),
                        pltpu.VMEM((tq, 1), jnp.float32),
                        pltpu.VMEM((tq, dh), jnp.float32)],
        compiler_params=_mosaic_params(("parallel", "parallel", "arbitrary")),
    )(q, k, v)


# ----------------------------- model wrapper -------------------------------

def encoder_layer_fwd(x, p, nhead):
    B, S, D = x.shape
    dh = D // nhead
    x2 = x.reshape(B * S, D)

    # --- self-attention block (post-norm) ---
    qkv = dense(x2, p["in_proj_wt"], p["in_proj_b"], out_dtype=ACT_DTYPE)   # (B*S, 3D)
    # split heads outside the kernel (cheap relayout) so heads become a grid axis
    qkv = qkv.reshape(B, S, 3, nhead, dh).transpose(2, 0, 3, 1, 4)          # (3, B, H, S, dh)
    q = qkv[0].reshape(B * nhead, S, dh)
    k = qkv[1].reshape(B * nhead, S, dh)
    v = qkv[2].reshape(B * nhead, S, dh)
    attn = mha(q, k, v)                                                     # (B*H, S, dh)
    attn = attn.reshape(B, nhead, S, dh).transpose(0, 2, 1, 3).reshape(B * S, D)

    x2 = dense_add_ln(attn, p["out_proj_wt"], p["out_proj_b"],
                      x2, p["ln1_g"], p["ln1_b"], out_dtype=ACT_DTYPE)      # LN(x + out_proj)

    # --- feed-forward block, fully fused ---
    x2 = ffn_add_ln(x2, p["lin1_wt"], p["lin1_b"], p["lin2_wt"], p["lin2_b"],
                    p["ln2_g"], p["ln2_b"], out_dtype=ACT_DTYPE)
    return x2.reshape(B, S, D)
    # TODO(synk): for tiny D/S the qkv->MHA->out_proj chain could be fused into one
    # per-(batch, head) kernel; left as three calls for generality.


@functools.partial(jax.jit, static_argnums=(2, 3))
def transformer_forward(x, prepped, pred_length, nhead=8):
    B, S, V = x.shape
    V_pad = prepped["input_wt"].shape[0]
    D = prepped["input_wt"].shape[1]

    xp = x if V_pad == V else jnp.pad(x, ((0, 0), (0, 0), (0, V_pad - V)))
    h = dense(xp.reshape(B * S, V_pad), prepped["input_wt"], prepped["input_b"],
              out_dtype=ACT_DTYPE).reshape(B, S, D)
    for lp in prepped["layers"]:
        h = encoder_layer_fwd(h, lp, nhead)
    hp = h[:, -pred_length:, :]
    out = dense(hp.reshape(B * pred_length, D), prepped["out_wt"], prepped["out_b"],
                out_dtype=jnp.float32)                                       # (B*P, V_pad)
    return out[:, :V].reshape(B, pred_length, V)


# ------------------------- parameters (canonical + prepared) ----------------

def init_params(key, num_variates, dim, depth, dim_ff=2048):
    """Canonical PyTorch-convention params: Linear weights are (out, in), f32."""
    def nxt():
        nonlocal key
        key, sub = jax.random.split(key)
        return sub

    def w(shape, scale=0.02):
        return (scale * jax.random.normal(nxt(), shape)).astype(jnp.float32)

    params = {
        "input_w": w((dim, num_variates)),
        "input_b": jnp.zeros((dim,), jnp.float32),
        "out_w": w((num_variates, dim)),
        "out_b": jnp.zeros((num_variates,), jnp.float32),
        "layers": [],
    }
    for _ in range(depth):
        params["layers"].append({
            "in_proj_w": w((3 * dim, dim)),
            "in_proj_b": jnp.zeros((3 * dim,), jnp.float32),
            "out_proj_w": w((dim, dim)),
            "out_proj_b": jnp.zeros((dim,), jnp.float32),
            "lin1_w": w((dim_ff, dim)),
            "lin1_b": jnp.zeros((dim_ff,), jnp.float32),
            "lin2_w": w((dim, dim_ff)),
            "lin2_b": jnp.zeros((dim,), jnp.float32),
            "ln1_g": jnp.ones((dim,), jnp.float32),
            "ln1_b": jnp.zeros((dim,), jnp.float32),
            "ln2_g": jnp.ones((dim,), jnp.float32),
            "ln2_b": jnp.zeros((dim,), jnp.float32),
        })
    return params


def prepare_params(params, nhead):
    """One-time prep for the Pallas path: transpose weights to (in, out) bf16,
    fold 1/sqrt(dh) into the q rows of in_proj, and zero-pad the edge projections
    (num_variates -> multiple of 128) so their tiles are lane-dense."""
    D = params["input_w"].shape[0]
    V = params["input_w"].shape[1]
    V_pad = _round_up(V, 128)
    dh = D // nhead
    scale = 1.0 / float(np.sqrt(dh))

    def cvt(w):                      # (out, in) f32 -> (in, out) bf16
        return jnp.asarray(w.T, dtype=MATMUL_DTYPE)

    input_wt = jnp.pad(cvt(params["input_w"]), ((0, V_pad - V), (0, 0)))   # (V_pad, D)
    out_wt = jnp.pad(cvt(params["out_w"]), ((0, 0), (0, V_pad - V)))       # (D, V_pad)
    out_b = jnp.pad(params["out_b"], (0, V_pad - V))

    prepped = {
        "input_wt": input_wt, "input_b": params["input_b"],
        "out_wt": out_wt, "out_b": out_b,
        "layers": [],
    }
    for p in params["layers"]:
        in_w = p["in_proj_w"].at[:D].multiply(scale)   # scale only the q rows
        in_b = p["in_proj_b"].at[:D].multiply(scale)
        prepped["layers"].append({
            "in_proj_wt": cvt(in_w), "in_proj_b": in_b,
            "out_proj_wt": cvt(p["out_proj_w"]), "out_proj_b": p["out_proj_b"],
            "lin1_wt": cvt(p["lin1_w"]), "lin1_b": p["lin1_b"],
            "lin2_wt": cvt(p["lin2_w"]), "lin2_b": p["lin2_b"],
            "ln1_g": p["ln1_g"], "ln1_b": p["ln1_b"],
            "ln2_g": p["ln2_g"], "ln2_b": p["ln2_b"],
        })
    return prepped


# --------------------------- pure-JAX reference -----------------------------

def _ref_forward(x, params, pred_length, nhead=8):
    def lin(t, w, b):
        return t @ w.T + b

    def ln(t, g, b, eps=LN_EPS):
        mu = t.mean(-1, keepdims=True)
        var = ((t - mu) ** 2).mean(-1, keepdims=True)
        return (t - mu) / jnp.sqrt(var + eps) * g + b

    B, S, V = x.shape
    D = params["input_w"].shape[0]
    dh = D // nhead
    h = lin(x, params["input_w"], params["input_b"])
    for p in params["layers"]:
        qkv = lin(h, p["in_proj_w"], p["in_proj_b"])
        q, k, v = jnp.split(qkv, 3, axis=-1)
        hq = lambda t: t.reshape(B, S, nhead, dh).transpose(0, 2, 1, 3)
        s = jnp.einsum("bhqd,bhkd->bhqk", hq(q) / jnp.sqrt(dh), hq(k))
        a = jax.nn.softmax(s, axis=-1)
        o = jnp.einsum("bhqk,bhkd->bhqd", a, hq(v)).transpose(0, 2, 1, 3).reshape(B, S, D)
        sa = lin(o, p["out_proj_w"], p["out_proj_b"])
        h = ln(h + sa, p["ln1_g"], p["ln1_b"])
        ff = lin(jax.nn.relu(lin(h, p["lin1_w"], p["lin1_b"])), p["lin2_w"], p["lin2_b"])
        h = ln(h + ff, p["ln2_g"], p["ln2_b"])
    return lin(h[:, -pred_length:, :], params["out_w"], params["out_b"])


# ----------------------------------- main -----------------------------------

if __name__ == "__main__":
    # Small shapes consistent with the module: dim must be divisible by nhead=8.
    num_variates, lookback_len, pred_length, dim, depth = 4, 8, 4, 32, 2
    batch, nhead = 2, 8

    key = jax.random.PRNGKey(0)
    pkey, xkey = jax.random.split(key)
    params = init_params(pkey, num_variates, dim, depth)
    prepped = prepare_params(params, nhead)
    src = jax.random.normal(xkey, (batch, lookback_len, num_variates), dtype=jnp.float32)

    out = jax.block_until_ready(transformer_forward(src, prepped, pred_length, nhead))
    assert out.shape == (batch, pred_length, num_variates), out.shape
    assert bool(jnp.all(jnp.isfinite(out)))

    # TODO(synk): dropout layers are identity (eval-mode semantics).
    ref = _ref_forward(src, params, pred_length, nhead)
    # bf16 weights + bf16 intermediate activations -> looser tolerance than pure f32.
    np.testing.assert_allclose(np.asarray(out), np.asarray(ref), rtol=3e-2, atol=3e-2)

    print("KERNEL_OK")
</pallas_src>

<mosaic_0001>
module attributes {stable_mosaic.version = 11 : i64} {
  func.func @_dense_kernel(%arg0: i32, %arg1: i32, %arg2: i32, %arg3: memref<16x128xf32, #tpu.memory_space<vmem>>, %arg4: memref<128x32xbf16, #tpu.memory_space<vmem>>, %arg5: memref<1x32xf32, #tpu.memory_space<vmem>>, %arg6: memref<16x32xbf16, #tpu.memory_space<vmem>>, %arg7: memref<16x32xf32, #tpu.memory_space<vmem>>) attributes {dimension_semantics = [#tpu.dimension_semantics<parallel>, #tpu.dimension_semantics<parallel>, #tpu.dimension_semantics<arbitrary>], iteration_bounds = array<i64: 1, 1, 1>, scalar_prefetch = 0 : i64, scratch_operands = 1 : i64, tpu.core_type = #tpu.core_type<tc>, window_params = [{transform_indices = @transform_0, window_bounds = array<i64: 16, 128>}, {transform_indices = @transform_1, window_bounds = array<i64: 128, 32>}, {transform_indices = @transform_2, window_bounds = array<i64: 1, 32>}, {transform_indices = @transform_3, window_bounds = array<i64: 16, 32>}]} {
    %c0_i32 = arith.constant 0 : i32
    %0 = arith.cmpi eq, %arg2, %c0_i32 : i32
    %1 = arith.extui %0 : i1 to i32
    %c0_i32_0 = arith.constant 0 : i32
    %2 = arith.cmpi ne, %1, %c0_i32_0 : i32
    scf.if %2 {
      %cst_10 = arith.constant 0.000000e+00 : f32
      %13 = vector.broadcast %cst_10 : f32 to vector<16x32xf32>
      %c0_11 = arith.constant 0 : index
      %c0_12 = arith.constant 0 : index
      %14 = vector.load %arg7[%c0_11, %c0_12] : memref<16x32xf32, #tpu.memory_space<vmem>>, vector<16x32xf32>
      tpu.vector_store %arg7[%c0_11, %c0_12], %13 {strides = array<i32>} : memref<16x32xf32, #tpu.memory_space<vmem>>, vector<16x32xf32>,
    } else {
    }
    %c0 = arith.constant 0 : index
    %c0_1 = arith.constant 0 : index
    %3 = vector.load %arg7[%c0, %c0_1] : memref<16x32xf32, #tpu.memory_space<vmem>>, vector<16x32xf32>
    %c0_2 = arith.constant 0 : index
    %c0_3 = arith.constant 0 : index
    %4 = vector.load %arg3[%c0_2, %c0_3] : memref<16x128xf32, #tpu.memory_space<vmem>>, vector<16x128xf32>
    %5 = arith.truncf %4 : vector<16x128xf32> to vector<16x128xbf16>
    %c0_4 = arith.constant 0 : index
    %c0_5 = arith.constant 0 : index
    %6 = vector.load %arg4[%c0_4, %c0_5] : memref<128x32xbf16, #tpu.memory_space<vmem>>, vector<128x32xbf16>
    %cst = arith.constant dense<0.000000e+00> : vector<16x32xf32>
    %7 = tpu.matmul %5, %6, %cst {dimension_numbers = #tpu.dot_dimension_numbers<[1], [0], [0], [1], [0, 0, 1, 1], [], []>} : vector<16x128xbf16>, vector<128x32xbf16>, vector<16x32xf32> -> vector<16x32xf32>
    %8 = arith.addf %3, %7 : vector<16x32xf32>
    %c0_6 = arith.constant 0 : index
    %c0_7 = arith.constant 0 : index
    %9 = vector.load %arg7[%c0_6, %c0_7] : memref<16x32xf32, #tpu.memory_space<vmem>>, vector<16x32xf32>
    tpu.vector_store %arg7[%c0_6, %c0_7], %8 {strides = array<i32>} : memref<16x32xf32, #tpu.memory_space<vmem>>, vector<16x32xf32>,
    %c0_i32_8 = arith.constant 0 : i32
    %10 = arith.cmpi eq, %arg2, %c0_i32_8 : i32
    %11 = arith.extui %10 : i1 to i32
    %c0_i32_9 = arith.constant 0 : i32
    %12 = arith.cmpi ne, %11, %c0_i32_9 : i32
    scf.if %12 {
      %c0_10 = arith.constant 0 : index
      %c0_11 = arith.constant 0 : index
      %13 = vector.load %arg7[%c0_10, %c0_11] : memref<16x32xf32, #tpu.memory_space<vmem>>, vector<16x32xf32>
      %c0_12 = arith.constant 0 : index
      %c0_13 = arith.constant 0 : index
      %14 = vector.load %arg5[%c0_12, %c0_13] : memref<1x32xf32, #tpu.memory_space<vmem>>, vector<1x32xf32>
      %15 = vector.broadcast %14 : vector<1x32xf32> to vector<16x32xf32>
      %16 = arith.addf %13, %15 : vector<16x32xf32>
      %17 = arith.truncf %16 : vector<16x32xf32> to vector<16x32xbf16>
      %c0_14 = arith.constant 0 : index
      %c0_15 = arith.constant 0 : index
      %18 = vector.load %arg6[%c0_14, %c0_15] : memref<16x32xbf16, #tpu.memory_space<vmem>>, vector<16x32xbf16>
      tpu.vector_store %arg6[%c0_14, %c0_15], %17 {strides = array<i32>} : memref<16x32xbf16, #tpu.memory_space<vmem>>, vector<16x32xbf16>,
    } else {
    }
    return
  }
  func.func @transform_0(%arg0: i32, %arg1: i32, %arg2: i32) -> (i32, i32) {
    %c0_i32 = arith.constant 0 : i32
    return %arg0, %arg2 : i32, i32
  }
  func.func @transform_1(%arg0: i32, %arg1: i32, %arg2: i32) -> (i32, i32) {
    %c0_i32 = arith.constant 0 : i32
    return %arg2, %arg1 : i32, i32
  }
  func.func @transform_2(%arg0: i32, %arg1: i32, %arg2: i32) -> (i32, i32) {
    %c0_i32 = arith.constant 0 : i32
    %c0_i32_0 = arith.constant 0 : i32
    return %c0_i32, %arg1 : i32, i32
  }
  func.func @transform_3(%arg0: i32, %arg1: i32, %arg2: i32) -> (i32, i32) {
    %c0_i32 = arith.constant 0 : i32
    return %arg0, %arg1 : i32, i32
  }
}

module attributes {stable_mosaic.version = 11 : i64} {
  func.func @_dense_kernel(%arg0: i32, %arg1: i32, %arg2: i32, %arg3: memref<16x32xbf16, #tpu.memory_space<vmem>>, %arg4: memref<32x96xbf16, #tpu.memory_space<vmem>>, %arg5: memref<1x96xf32, #tpu.memory_space<vmem>>, %arg6: memref<16x96xbf16, #tpu.memory_space<vmem>>, %arg7: memref<16x96xf32, #tpu.memory_space<vmem>>) attributes {dimension_semantics = [#tpu.dimension_semantics<parallel>, #tpu.dimension_semantics<parallel>, #tpu.dimension_semantics<arbitrary>], iteration_bounds = array<i64: 1, 1, 1>, scalar_prefetch = 0 : i64, scratch_operands = 1 : i64, tpu.core_type = #tpu.core_type<tc>, window_params = [{transform_indices = @transform_0, window_bounds = array<i64: 16, 32>}, {transform_indices = @transform_1, window_bounds = array<i64: 32, 96>}, {transform_indices = @transform_2, window_bounds = array<i64: 1, 96>}, {transform_indices = @transform_3, window_bounds = array<i64: 16, 96>}]} {
    %c0_i32 = arith.constant 0 : i32
    %0 = arith.cmpi eq, %arg2, %c0_i32 : i32
    %1 = arith.extui %0 : i1 to i32
    %c0_i32_0 = arith.constant 0 : i32
    %2 = arith.cmpi ne, %1, %c0_i32_0 : i32
    scf.if %2 {
      %cst_10 = arith.constant 0.000000e+00 : f32
      %12 = vector.broadcast %cst_10 : f32 to vector<16x96xf32>
      %c0_11 = arith.constant 0 : index
      %c0_12 = arith.constant 0 : index
      %13 = vector.load %arg7[%c0_11, %c0_12] : memref<16x96xf32, #tpu.memory_space<vmem>>, vector<16x96xf32>
      tpu.vector_store %arg7[%c0_11, %c0_12], %12 {strides = array<i32>} : memref<16x96xf32, #tpu.memory_space<vmem>>, vector<16x96xf32>,
    } else {
    }
    %c0 = arith.constant 0 : index
    %c0_1 = arith.constant 0 : index
    %3 = vector.load %arg7[%c0, %c0_1] : memref<16x96xf32, #tpu.memory_space<vmem>>, vector<16x96xf32>
    %c0_2 = arith.constant 0 : index
    %c0_3 = arith.constant 0 : index
    %4 = vector.load %arg3[%c0_2, %c0_3] : memref<16x32xbf16, #tpu.memory_space<vmem>>, vector<16x32xbf16>
    %c0_4 = arith.constant 0 : index
    %c0_5 = arith.constant 0 : index
    %5 = vector.load %arg4[%c0_4, %c0_5] : memref<32x96xbf16, #tpu.memory_space<vmem>>, vector<32x96xbf16>
    %cst = arith.constant dense<0.000000e+00> : vector<16x96xf32>
    %6 = tpu.matmul %4, %5, %cst {dimension_numbers = #tpu.dot_dimension_numbers<[1], [0], [0], [1], [0, 0, 1, 1], [], []>} : vector<16x32xbf16>, vector<32x96xbf16>, vector<16x96xf32> -> vector<16x96xf32>
    %7 = arith.addf %3, %6 : vector<16x96xf32>
    %c0_6 = arith.constant 0 : index
    %c0_7 = arith.constant 0 : index
    %8 = vector.load %arg7[%c0_6, %c0_7] : memref<16x96xf32, #tpu.memory_space<vmem>>, vector<16x96xf32>
    tpu.vector_store %arg7[%c0_6, %c0_7], %7 {strides = array<i32>} : memref<16x96xf32, #tpu.memory_space<vmem>>, vector<16x96xf32>,
    %c0_i32_8 = arith.constant 0 : i32
    %9 = arith.cmpi eq, %arg2, %c0_i32_8 : i32
    %10 = arith.extui %9 : i1 to i32
    %c0_i32_9 = arith.constant 0 : i32
    %11 = arith.cmpi ne, %10, %c0_i32_9 : i32
    scf.if %11 {
      %c0_10 = arith.constant 0 : index
      %c0_11 = arith.constant 0 : index
      %12 = vector.load %arg7[%c0_10, %c0_11] : memref<16x96xf32, #tpu.memory_space<vmem>>, vector<16x96xf32>
      %c0_12 = arith.constant 0 : index
      %c0_13 = arith.constant 0 : index
      %13 = vector.load %arg5[%c0_12, %c0_13] : memref<1x96xf32, #tpu.memory_space<vmem>>, vector<1x96xf32>
      %14 = vector.broadcast %13 : vector<1x96xf32> to vector<16x96xf32>
      %15 = arith.addf %12, %14 : vector<16x96xf32>
      %16 = arith.truncf %15 : vector<16x96xf32> to vector<16x96xbf16>
      %c0_14 = arith.constant 0 : index
      %c0_15 = arith.constant 0 : index
      %17 = vector.load %arg6[%c0_14, %c0_15] : memref<16x96xbf16, #tpu.memory_space<vmem>>, vector<16x96xbf16>
      tpu.vector_store %arg6[%c0_14, %c0_15], %16 {strides = array<i32>} : memref<16x96xbf16, #tpu.memory_space<vmem>>, vector<16x96xbf16>,
    } else {
    }
    return
  }
  func.func @transform_0(%arg0: i32, %arg1: i32, %arg2: i32) -> (i32, i32) {
    %c0_i32 = arith.constant 0 : i32
    return %arg0, %arg2 : i32, i32
  }
  func.func @transform_1(%arg0: i32, %arg1: i32, %arg2: i32) -> (i32, i32) {
    %c0_i32 = arith.constant 0 : i32
    return %arg2, %arg1 : i32, i32
  }
  func.func @transform_2(%arg0: i32, %arg1: i32, %arg2: i32) -> (i32, i32) {
    %c0_i32 = arith.constant 0 : i32
    %c0_i32_0 = arith.constant 0 : i32
    return %c0_i32, %arg1 : i32, i32
  }
  func.func @transform_3(%arg0: i32, %arg1: i32, %arg2: i32) -> (i32, i32) {
    %c0_i32 = arith.constant 0 : i32
    return %arg0, %arg1 : i32, i32
  }
}

module attributes {stable_mosaic.version = 11 : i64} {
  func.func @_mha_kernel(%arg0: i32, %arg1: i32, %arg2: i32, %arg3: memref<1x8x4xbf16, #tpu.memory_space<vmem>>, %arg4: memref<1x8x4xbf16, #tpu.memory_space<vmem>>, %arg5: memref<1x8x4xbf16, #tpu.memory_space<vmem>>, %arg6: memref<1x8x4xbf16, #tpu.memory_space<vmem>>, %arg7: memref<8x1xf32, #tpu.memory_space<vmem>>, %arg8: memref<8x1xf32, #tpu.memory_space<vmem>>, %arg9: memref<8x4xf32, #tpu.memory_space<vmem>>) attributes {dimension_semantics = [#tpu.dimension_semantics<parallel>, #tpu.dimension_semantics<parallel>, #tpu.dimension_semantics<arbitrary>], iteration_bounds = array<i64: 16, 1, 1>, scalar_prefetch = 0 : i64, scratch_operands = 3 : i64, tpu.core_type = #tpu.core_type<tc>, window_params = [{transform_indices = @transform_0, window_bounds = array<i64: 1, 8, 4>}, {transform_indices = @transform_1, window_bounds = array<i64: 1, 8, 4>}, {transform_indices = @transform_2, window_bounds = array<i64: 1, 8, 4>}, {transform_indices = @transform_3, window_bounds = array<i64: 1, 8, 4>}]} {
    %c0_i32 = arith.constant 0 : i32
    %0 = arith.cmpi eq, %arg2, %c0_i32 : i32
    %1 = arith.extui %0 : i1 to i32
    %c0_i32_0 = arith.constant 0 : i32
    %2 = arith.cmpi ne, %1, %c0_i32_0 : i32
    scf.if %2 {
      %cst_26 = arith.constant 0xFF800000 : f32
      %36 = vector.broadcast %cst_26 : f32 to vector<8x1xf32>
      %c0_27 = arith.constant 0 : index
      %c0_28 = arith.constant 0 : index
      %37 = vector.load %arg7[%c0_27, %c0_28] : memref<8x1xf32, #tpu.memory_space<vmem>>, vector<8x1xf32>
      tpu.vector_store %arg7[%c0_27, %c0_28], %36 {strides = array<i32>} : memref<8x1xf32, #tpu.memory_space<vmem>>, vector<8x1xf32>,
      %cst_29 = arith.constant 0.000000e+00 : f32
      %38 = vector.broadcast %cst_29 : f32 to vector<8x1xf32>
      %c0_30 = arith.constant 0 : index
      %c0_31 = arith.constant 0 : index
      %39 = vector.load %arg8[%c0_30, %c0_31] : memref<8x1xf32, #tpu.memory_space<vmem>>, vector<8x1xf32>
      tpu.vector_store %arg8[%c0_30, %c0_31], %38 {strides = array<i32>} : memref<8x1xf32, #tpu.memory_space<vmem>>, vector<8x1xf32>,
      %cst_32 = arith.constant 0.000000e+00 : f32
      %40 = vector.broadcast %cst_32 : f32 to vector<8x4xf32>
      %c0_33 = arith.constant 0 : index
      %c0_34 = arith.constant 0 : index
      %41 = vector.load %arg9[%c0_33, %c0_34] : memref<8x4xf32, #tpu.memory_space<vmem>>, vector<8x4xf32>
      tpu.vector_store %arg9[%c0_33, %c0_34], %40 {strides = array<i32>} : memref<8x4xf32, #tpu.memory_space<vmem>>, vector<8x4xf32>,
    } else {
    }
    %c0 = arith.constant 0 : index
    %c0_1 = arith.constant 0 : index
    %c0_2 = arith.constant 0 : index
    %3 = vector.load %arg3[%c0, %c0_1, %c0_2] : memref<1x8x4xbf16, #tpu.memory_space<vmem>>, vector<1x8x4xbf16>
    %4 = vector.shape_cast %3 : vector<1x8x4xbf16> to vector<8x4xbf16>
    %c0_3 = arith.constant 0 : index
    %c0_4 = arith.constant 0 : index
    %c0_5 = arith.constant 0 : index
    %5 = vector.load %arg4[%c0_3, %c0_4, %c0_5] : memref<1x8x4xbf16, #tpu.memory_space<vmem>>, vector<1x8x4xbf16>
    %6 = vector.shape_cast %5 : vector<1x8x4xbf16> to vector<8x4xbf16>
    %c0_6 = arith.constant 0 : index
    %c0_7 = arith.constant 0 : index
    %c0_8 = arith.constant 0 : index
    %7 = vector.load %arg5[%c0_6, %c0_7, %c0_8] : memref<1x8x4xbf16, #tpu.memory_space<vmem>>, vector<1x8x4xbf16>
    %8 = vector.shape_cast %7 : vector<1x8x4xbf16> to vector<8x4xbf16>
    %cst = arith.constant dense<0.000000e+00> : vector<8x8xf32>
    %9 = tpu.matmul %4, %6, %cst {dimension_numbers = #tpu.dot_dimension_numbers<[1], [1], [0], [0], [0, 0, 1, 0], [], []>} : vector<8x4xbf16>, vector<8x4xbf16>, vector<8x8xf32> -> vector<8x8xf32>
    %c0_9 = arith.constant 0 : index
    %c0_10 = arith.constant 0 : index
    %10 = vector.load %arg7[%c0_9, %c0_10] : memref<8x1xf32, #tpu.memory_space<vmem>>, vector<8x1xf32>
    %cst_11 = arith.constant dense<0xFF800000> : vector<8xf32>
    %11 = vector.multi_reduction <maximumf>, %9, %cst_11 [1] : vector<8x8xf32> to vector<8xf32>
    %12 = vector.shape_cast %11 : vector<8xf32> to vector<8x1xf32>
    %13 = arith.maximumf %10, %12 : vector<8x1xf32>
    %14 = arith.subf %10, %13 : vector<8x1xf32>
    %15 = math.exp %14 : vector<8x1xf32>
    %16 = vector.broadcast %13 : vector<8x1xf32> to vector<8x8xf32>
    %17 = arith.subf %9, %16 : vector<8x8xf32>
    %18 = math.exp %17 : vector<8x8xf32>
    %c0_12 = arith.constant 0 : index
    %c0_13 = arith.constant 0 : index
    %19 = vector.load %arg8[%c0_12, %c0_13] : memref<8x1xf32, #tpu.memory_space<vmem>>, vector<8x1xf32>
    %20 = arith.mulf %15, %19 : vector<8x1xf32>
    %cst_14 = arith.constant dense<0.000000e+00> : vector<8xf32>
    %21 = vector.multi_reduction <add>, %18, %cst_14 [1] : vector<8x8xf32> to vector<8xf32>
    %22 = vector.shape_cast %21 : vector<8xf32> to vector<8x1xf32>
    %23 = arith.addf %20, %22 : vector<8x1xf32>
    %c0_15 = arith.constant 0 : index
    %c0_16 = arith.constant 0 : index
    %24 = vector.load %arg8[%c0_15, %c0_16] : memref<8x1xf32, #tpu.memory_space<vmem>>, vector<8x1xf32>
    tpu.vector_store %arg8[%c0_15, %c0_16], %23 {strides = array<i32>} : memref<8x1xf32, #tpu.memory_space<vmem>>, vector<8x1xf32>,
    %c0_17 = arith.constant 0 : index
    %c0_18 = arith.constant 0 : index
    %25 = vector.load %arg9[%c0_17, %c0_18] : memref<8x4xf32, #tpu.memory_space<vmem>>, vector<8x4xf32>
    %26 = vector.broadcast %15 : vector<8x1xf32> to vector<8x4xf32>
    %27 = arith.mulf %26, %25 : vector<8x4xf32>
    %28 = arith.truncf %18 : vector<8x8xf32> to vector<8x8xbf16>
    %cst_19 = arith.constant dense<0.000000e+00> : vector<8x4xf32>
    %29 = tpu.matmul %28, %8, %cst_19 {dimension_numbers = #tpu.dot_dimension_numbers<[1], [0], [0], [1], [0, 0, 1, 1], [], []>} : vector<8x8xbf16>, vector<8x4xbf16>, vector<8x4xf32> -> vector<8x4xf32>
    %30 = arith.addf %27, %29 : vector<8x4xf32>
    %c0_20 = arith.constant 0 : index
    %c0_21 = arith.constant 0 : index
    %31 = vector.load %arg9[%c0_20, %c0_21] : memref<8x4xf32, #tpu.memory_space<vmem>>, vector<8x4xf32>
    tpu.vector_store %arg9[%c0_20, %c0_21], %30 {strides = array<i32>} : memref<8x4xf32, #tpu.memory_space<vmem>>, vector<8x4xf32>,
    %c0_22 = arith.constant 0 : index
    %c0_23 = arith.constant 0 : index
    %32 = vector.load %arg7[%c0_22, %c0_23] : memref<8x1xf32, #tpu.memory_space<vmem>>, vector<8x1xf32>
    tpu.vector_store %arg7[%c0_22, %c0_23], %13 {strides = array<i32>} : memref<8x1xf32, #tpu.memory_space<vmem>>, vector<8x1xf32>,
    %c0_i32_24 = arith.constant 0 : i32
    %33 = arith.cmpi eq, %arg2, %c0_i32_24 : i32
    %34 = arith.extui %33 : i1 to i32
    %c0_i32_25 = arith.constant 0 : i32
    %35 = arith.cmpi ne, %34, %c0_i32_25 : i32
    scf.if %35 {
      %c0_26 = arith.constant 0 : index
      %c0_27 = arith.constant 0 : index
      %36 = vector.load %arg9[%c0_26, %c0_27] : memref<8x4xf32, #tpu.memory_space<vmem>>, vector<8x4xf32>
      %c0_28 = arith.constant 0 : index
      %c0_29 = arith.constant 0 : index
      %37 = vector.load %arg8[%c0_28, %c0_29] : memref<8x1xf32, #tpu.memory_space<vmem>>, vector<8x1xf32>
      %38 = tpu.reciprocal %37 {approx = true} : vector<8x1xf32> -> vector<8x1xf32>
      %39 = vector.broadcast %38 : vector<8x1xf32> to vector<8x4xf32>
      %40 = arith.mulf %36, %39 : vector<8x4xf32>
      %41 = vector.shape_cast %40 : vector<8x4xf32> to vector<1x8x4xf32>
      %42 = arith.truncf %41 : vector<1x8x4xf32> to vector<1x8x4xbf16>
      %c0_30 = arith.constant 0 : index
      %c0_31 = arith.constant 0 : index
      %c0_32 = arith.constant 0 : index
      %43 = vector.load %arg6[%c0_30, %c0_31, %c0_32] : memref<1x8x4xbf16, #tpu.memory_space<vmem>>, vector<1x8x4xbf16>
      tpu.vector_store %arg6[%c0_30, %c0_31, %c0_32], %42 {strides = array<i32>} : memref<1x8x4xbf16, #tpu.memory_space<vmem>>, vector<1x8x4xbf16>,
    } else {
    }
    return
  }
  func.func @transform_0(%arg0: i32, %arg1: i32, %arg2: i32) -> (i32, i32, i32) {
    %c0_i32 = arith.constant 0 : i32
    %c0_i32_0 = arith.constant 0 : i32
    return %arg0, %arg1, %c0_i32 : i32, i32, i32
  }
  func.func @transform_1(%arg0: i32, %arg1: i32, %arg2: i32) -> (i32, i32, i32) {
    %c0_i32 = arith.constant 0 : i32
    %c0_i32_0 = arith.constant 0 : i32
    return %arg0, %arg2, %c0_i32 : i32, i32, i32
  }
  func.func @transform_2(%arg0: i32, %arg1: i32, %arg2: i32) -> (i32, i32, i32) {
    %c0_i32 = arith.constant 0 : i32
    %c0_i32_0 = arith.constant 0 : i32
    return %arg0, %arg2, %c0_i32 : i32, i32, i32
  }
  func.func @transform_3(%arg0: i32, %arg1: i32, %arg2: i32) -> (i32, i32, i32) {
    %c0_i32 = arith.constant 0 : i32
    %c0_i32_0 = arith.constant 0 : i32
    return %arg0, %arg1, %c0_i32 : i32, i32, i32
  }
}

module attributes {stable_mosaic.version = 11 : i64} {
  func.func @_dense_add_ln_kernel(%arg0: i32, %arg1: i32, %arg2: memref<16x32xbf16, #tpu.memory_space<vmem>>, %arg3: memref<32x32xbf16, #tpu.memory_space<vmem>>, %arg4: memref<1x32xf32, #tpu.memory_space<vmem>>, %arg5: memref<16x32xbf16, #tpu.memory_space<vmem>>, %arg6: memref<1x32xf32, #tpu.memory_space<vmem>>, %arg7: memref<1x32xf32, #tpu.memory_space<vmem>>, %arg8: memref<16x32xbf16, #tpu.memory_space<vmem>>, %arg9: memref<16x32xf32, #tpu.memory_space<vmem>>) attributes {dimension_semantics = [#tpu.dimension_semantics<parallel>, #tpu.dimension_semantics<arbitrary>], iteration_bounds = array<i64: 1, 1>, scalar_prefetch = 0 : i64, scratch_operands = 1 : i64, tpu.core_type = #tpu.core_type<tc>, window_params = [{transform_indices = @transform_0, window_bounds = array<i64: 16, 32>}, {transform_indices = @transform_1, window_bounds = array<i64: 32, 32>}, {pipeline_mode = #tpu.pipeline_mode<synchronous>, transform_indices = @transform_2, window_bounds = array<i64: 1, 32>}, {transform_indices = @transform_3, window_bounds = array<i64: 16, 32>}, {pipeline_mode = #tpu.pipeline_mode<synchronous>, transform_indices = @transform_4, window_bounds = array<i64: 1, 32>}, {pipeline_mode = #tpu.pipeline_mode<synchronous>, transform_indices = @transform_5, window_bounds = array<i64: 1, 32>}, {transform_indices = @transform_6, window_bounds = array<i64: 16, 32>}]} {
    %c0_i32 = arith.constant 0 : i32
    %0 = arith.cmpi eq, %arg1, %c0_i32 : i32
    %1 = arith.extui %0 : i1 to i32
    %c0_i32_0 = arith.constant 0 : i32
    %2 = arith.cmpi ne, %1, %c0_i32_0 : i32
    scf.if %2 {
      %cst_10 = arith.constant 0.000000e+00 : f32
      %12 = vector.broadcast %cst_10 : f32 to vector<16x32xf32>
      %c0_11 = arith.constant 0 : index
      %c0_12 = arith.constant 0 : index
      %13 = vector.load %arg9[%c0_11, %c0_12] : memref<16x32xf32, #tpu.memory_space<vmem>>, vector<16x32xf32>
      tpu.vector_store %arg9[%c0_11, %c0_12], %12 {strides = array<i32>} : memref<16x32xf32, #tpu.memory_space<vmem>>, vector<16x32xf32>,
    } else {
    }
    %c0 = arith.constant 0 : index
    %c0_1 = arith.constant 0 : index
    %3 = vector.load %arg9[%c0, %c0_1] : memref<16x32xf32, #tpu.memory_space<vmem>>, vector<16x32xf32>
    %c0_2 = arith.constant 0 : index
    %c0_3 = arith.constant 0 : index
    %4 = vector.load %arg2[%c0_2, %c0_3] : memref<16x32xbf16, #tpu.memory_space<vmem>>, vector<16x32xbf16>
    %c0_4 = arith.constant 0 : index
    %c0_5 = arith.constant 0 : index
    %5 = vector.load %arg3[%c0_4, %c0_5] : memref<32x32xbf16, #tpu.memory_space<vmem>>, vector<32x32xbf16>
    %cst = arith.constant dense<0.000000e+00> : vector<16x32xf32>
    %6 = tpu.matmul %4, %5, %cst {dimension_numbers = #tpu.dot_dimension_numbers<[1], [0], [0], [1], [0, 0, 1, 1], [], []>} : vector<16x32xbf16>, vector<32x32xbf16>, vector<16x32xf32> -> vector<16x32xf32>
    %7 = arith.addf %3, %6 : vector<16x32xf32>
    %c0_6 = arith.constant 0 : index
    %c0_7 = arith.constant 0 : index
    %8 = vector.load %arg9[%c0_6, %c0_7] : memref<16x32xf32, #tpu.memory_space<vmem>>, vector<16x32xf32>
    tpu.vector_store %arg9[%c0_6, %c0_7], %7 {strides = array<i32>} : memref<16x32xf32, #tpu.memory_space<vmem>>, vector<16x32xf32>,
    %c0_i32_8 = arith.constant 0 : i32
    %9 = arith.cmpi eq, %arg1, %c0_i32_8 : i32
    %10 = arith.extui %9 : i1 to i32
    %c0_i32_9 = arith.constant 0 : i32
    %11 = arith.cmpi ne, %10, %c0_i32_9 : i32
    scf.if %11 {
      %c0_10 = arith.constant 0 : index
      %c0_11 = arith.constant 0 : index
      %12 = vector.load %arg9[%c0_10, %c0_11] : memref<16x32xf32, #tpu.memory_space<vmem>>, vector<16x32xf32>
      %c0_12 = arith.constant 0 : index
      %c0_13 = arith.constant 0 : index
      %13 = vector.load %arg4[%c0_12, %c0_13] : memref<1x32xf32, #tpu.memory_space<vmem>>, vector<1x32xf32>
      %14 = vector.broadcast %13 : vector<1x32xf32> to vector<16x32xf32>
      %15 = arith.addf %12, %14 : vector<16x32xf32>
      %c0_14 = arith.constant 0 : index
      %c0_15 = arith.constant 0 : index
      %16 = vector.load %arg5[%c0_14, %c0_15] : memref<16x32xbf16, #tpu.memory_space<vmem>>, vector<16x32xbf16>
      %17 = arith.extf %16 : vector<16x32xbf16> to vector<16x32xf32>
      %18 = arith.addf %15, %17 : vector<16x32xf32>
      %cst_16 = arith.constant dense<0.000000e+00> : vector<16xf32>
      %19 = vector.multi_reduction <add>, %18, %cst_16 [1] : vector<16x32xf32> to vector<16xf32>
      %20 = vector.shape_cast %19 : vector<16xf32> to vector<16x1xf32>
      %cst_17 = arith.constant 3.200000e+01 : f32
      %21 = vector.broadcast %cst_17 : f32 to vector<16x1xf32>
      %22 = arith.divf %20, %21 : vector<16x1xf32>
      %23 = vector.broadcast %22 : vector<16x1xf32> to vector<16x32xf32>
      %24 = arith.subf %18, %23 : vector<16x32xf32>
      %25 = arith.mulf %24, %24 : vector<16x32xf32>
      %cst_18 = arith.constant dense<0.000000e+00> : vector<16xf32>
      %26 = vector.multi_reduction <add>, %25, %cst_18 [1] : vector<16x32xf32> to vector<16xf32>
      %27 = vector.shape_cast %26 : vector<16xf32> to vector<16x1xf32>
      %cst_19 = arith.constant 3.200000e+01 : f32
      %28 = vector.broadcast %cst_19 : f32 to vector<16x1xf32>
      %29 = arith.divf %27, %28 : vector<16x1xf32>
      %30 = vector.broadcast %22 : vector<16x1xf32> to vector<16x32xf32>
      %31 = arith.subf %18, %30 : vector<16x32xf32>
      %cst_20 = arith.constant 9.99999974E-6 : f32
      %32 = vector.broadcast %cst_20 : f32 to vector<16x1xf32>
      %33 = arith.addf %29, %32 : vector<16x1xf32>
      %34 = math.rsqrt %33 : vector<16x1xf32>
      %35 = vector.broadcast %34 : vector<16x1xf32> to vector<16x32xf32>
      %36 = arith.mulf %31, %35 : vector<16x32xf32>
      %c0_21 = arith.constant 0 : index
      %c0_22 = arith.constant 0 : index
      %37 = vector.load %arg6[%c0_21, %c0_22] : memref<1x32xf32, #tpu.memory_space<vmem>>, vector<1x32xf32>
      %38 = vector.broadcast %37 : vector<1x32xf32> to vector<16x32xf32>
      %39 = arith.mulf %36, %38 : vector<16x32xf32>
      %c0_23 = arith.constant 0 : index
      %c0_24 = arith.constant 0 : index
      %40 = vector.load %arg7[%c0_23, %c0_24] : memref<1x32xf32, #tpu.memory_space<vmem>>, vector<1x32xf32>
      %41 = vector.broadcast %40 : vector<1x32xf32> to vector<16x32xf32>
      %42 = arith.addf %39, %41 : vector<16x32xf32>
      %43 = arith.truncf %42 : vector<16x32xf32> to vector<16x32xbf16>
      %c0_25 = arith.constant 0 : index
      %c0_26 = arith.constant 0 : index
      %44 = vector.load %arg8[%c0_25, %c0_26] : memref<16x32xbf16, #tpu.memory_space<vmem>>, vector<16x32xbf16>
      tpu.vector_store %arg8[%c0_25, %c0_26], %43 {strides = array<i32>} : memref<16x32xbf16, #tpu.memory_space<vmem>>, vector<16x32xbf16>,
    } else {
    }
    return
  }
  func.func @transform_0(%arg0: i32, %arg1: i32) -> (i32, i32) {
    %c0_i32 = arith.constant 0 : i32
    return %arg0, %arg1 : i32, i32
  }
  func.func @transform_1(%arg0: i32, %arg1: i32) -> (i32, i32) {
    %c0_i32 = arith.constant 0 : i32
    %c0_i32_0 = arith.constant 0 : i32
    return %arg1, %c0_i32 : i32, i32
  }
  func.func @transform_2(%arg0: i32, %arg1: i32) -> (i32, i32) {
    %c0_i32 = arith.constant 0 : i32
    %c0_i32_0 = arith.constant 0 : i32
    %c0_i32_1 = arith.constant 0 : i32
    return %c0_i32, %c0_i32_0 : i32, i32
  }
  func.func @transform_3(%arg0: i32, %arg1: i32) -> (i32, i32) {
    %c0_i32 = arith.constant 0 : i32
    %c0_i32_0 = arith.constant 0 : i32
    return %arg0, %c0_i32 : i32, i32
  }
  func.func @transform_4(%arg0: i32, %arg1: i32) -> (i32, i32) {
    %c0_i32 = arith.constant 0 : i32
    %c0_i32_0 = arith.constant 0 : i32
    %c0_i32_1 = arith.constant 0 : i32
    return %c0_i32, %c0_i32_0 : i32, i32
  }
  func.func @transform_5(%arg0: i32, %arg1: i32) -> (i32, i32) {
    %c0_i32 = arith.constant 0 : i32
    %c0_i32_0 = arith.constant 0 : i32
    %c0_i32_1 = arith.constant 0 : i32
    return %c0_i32, %c0_i32_0 : i32, i32
  }
  func.func @transform_6(%arg0: i32, %arg1: i32) -> (i32, i32) {
    %c0_i32 = arith.constant 0 : i32
    %c0_i32_0 = arith.constant 0 : i32
    return %arg0, %c0_i32 : i32, i32
  }
}

module attributes {stable_mosaic.version = 11 : i64} {
  func.func @_ffn_kernel(%arg0: i32, %arg1: i32, %arg2: memref<16x32xbf16, #tpu.memory_space<vmem>>, %arg3: memref<32x512xbf16, #tpu.memory_space<vmem>>, %arg4: memref<1x512xf32, #tpu.memory_space<vmem>>, %arg5: memref<512x32xbf16, #tpu.memory_space<vmem>>, %arg6: memref<1x32xf32, #tpu.memory_space<vmem>>, %arg7: memref<1x32xf32, #tpu.memory_space<vmem>>, %arg8: memref<1x32xf32, #tpu.memory_space<vmem>>, %arg9: memref<16x32xbf16, #tpu.memory_space<vmem>>, %arg10: memref<16x32xf32, #tpu.memory_space<vmem>>) attributes {dimension_semantics = [#tpu.dimension_semantics<parallel>, #tpu.dimension_semantics<arbitrary>], iteration_bounds = array<i64: 1, 4>, scalar_prefetch = 0 : i64, scratch_operands = 1 : i64, tpu.core_type = #tpu.core_type<tc>, window_params = [{transform_indices = @transform_0, window_bounds = array<i64: 16, 32>}, {transform_indices = @transform_1, window_bounds = array<i64: 32, 512>}, {transform_indices = @transform_2, window_bounds = array<i64: 1, 512>}, {transform_indices = @transform_3, window_bounds = array<i64: 512, 32>}, {pipeline_mode = #tpu.pipeline_mode<synchronous>, transform_indices = @transform_4, window_bounds = array<i64: 1, 32>}, {pipeline_mode = #tpu.pipeline_mode<synchronous>, transform_indices = @transform_5, window_bounds = array<i64: 1, 32>}, {pipeline_mode = #tpu.pipeline_mode<synchronous>, transform_indices = @transform_6, window_bounds = array<i64: 1, 32>}, {transform_indices = @transform_7, window_bounds = array<i64: 16, 32>}]} {
    %c0_i32 = arith.constant 0 : i32
    %0 = arith.cmpi eq, %arg1, %c0_i32 : i32
    %1 = arith.extui %0 : i1 to i32
    %c0_i32_0 = arith.constant 0 : i32
    %2 = arith.cmpi ne, %1, %c0_i32_0 : i32
    scf.if %2 {
      %cst_15 = arith.constant 0.000000e+00 : f32
      %20 = vector.broadcast %cst_15 : f32 to vector<16x32xf32>
      %c0_16 = arith.constant 0 : index
      %c0_17 = arith.constant 0 : index
      %21 = vector.load %arg10[%c0_16, %c0_17] : memref<16x32xf32, #tpu.memory_space<vmem>>, vector<16x32xf32>
      tpu.vector_store %arg10[%c0_16, %c0_17], %20 {strides = array<i32>} : memref<16x32xf32, #tpu.memory_space<vmem>>, vector<16x32xf32>,
    } else {
    }
    %c0 = arith.constant 0 : index
    %c0_1 = arith.constant 0 : index
    %3 = vector.load %arg2[%c0, %c0_1] : memref<16x32xbf16, #tpu.memory_space<vmem>>, vector<16x32xbf16>
    %c0_2 = arith.constant 0 : index
    %c0_3 = arith.constant 0 : index
    %4 = vector.load %arg3[%c0_2, %c0_3] : memref<32x512xbf16, #tpu.memory_space<vmem>>, vector<32x512xbf16>
    %cst = arith.constant dense<0.000000e+00> : vector<16x512xf32>
    %5 = tpu.matmul %3, %4, %cst {dimension_numbers = #tpu.dot_dimension_numbers<[1], [0], [0], [1], [0, 0, 1, 1], [], []>} : vector<16x32xbf16>, vector<32x512xbf16>, vector<16x512xf32> -> vector<16x512xf32>
    %c0_4 = arith.constant 0 : index
    %c0_5 = arith.constant 0 : index
    %6 = vector.load %arg4[%c0_4, %c0_5] : memref<1x512xf32, #tpu.memory_space<vmem>>, vector<1x512xf32>
    %7 = vector.broadcast %6 : vector<1x512xf32> to vector<16x512xf32>
    %8 = arith.addf %5, %7 : vector<16x512xf32>
    %cst_6 = arith.constant 0.000000e+00 : f32
    %9 = vector.broadcast %cst_6 : f32 to vector<16x512xf32>
    %10 = arith.maximumf %8, %9 : vector<16x512xf32>
    %c0_7 = arith.constant 0 : index
    %c0_8 = arith.constant 0 : index
    %11 = vector.load %arg10[%c0_7, %c0_8] : memref<16x32xf32, #tpu.memory_space<vmem>>, vector<16x32xf32>
    %12 = arith.truncf %10 : vector<16x512xf32> to vector<16x512xbf16>
    %c0_9 = arith.constant 0 : index
    %c0_10 = arith.constant 0 : index
    %13 = vector.load %arg5[%c0_9, %c0_10] : memref<512x32xbf16, #tpu.memory_space<vmem>>, vector<512x32xbf16>
    %cst_11 = arith.constant dense<0.000000e+00> : vector<16x32xf32>
    %14 = tpu.matmul %12, %13, %cst_11 {dimension_numbers = #tpu.dot_dimension_numbers<[1], [0], [0], [1], [0, 0, 1, 1], [], []>} : vector<16x512xbf16>, vector<512x32xbf16>, vector<16x32xf32> -> vector<16x32xf32>
    %15 = arith.addf %11, %14 : vector<16x32xf32>
    %c0_12 = arith.constant 0 : index
    %c0_13 = arith.constant 0 : index
    %16 = vector.load %arg10[%c0_12, %c0_13] : memref<16x32xf32, #tpu.memory_space<vmem>>, vector<16x32xf32>
    tpu.vector_store %arg10[%c0_12, %c0_13], %15 {strides = array<i32>} : memref<16x32xf32, #tpu.memory_space<vmem>>, vector<16x32xf32>,
    %c3_i32 = arith.constant 3 : i32
    %17 = arith.cmpi eq, %arg1, %c3_i32 : i32
    %18 = arith.extui %17 : i1 to i32
    %c0_i32_14 = arith.constant 0 : i32
    %19 = arith.cmpi ne, %18, %c0_i32_14 : i32
    scf.if %19 {
      %c0_15 = arith.constant 0 : index
      %c0_16 = arith.constant 0 : index
      %20 = vector.load %arg10[%c0_15, %c0_16] : memref<16x32xf32, #tpu.memory_space<vmem>>, vector<16x32xf32>
      %c0_17 = arith.constant 0 : index
      %c0_18 = arith.constant 0 : index
      %21 = vector.load %arg6[%c0_17, %c0_18] : memref<1x32xf32, #tpu.memory_space<vmem>>, vector<1x32xf32>
      %22 = vector.broadcast %21 : vector<1x32xf32> to vector<16x32xf32>
      %23 = arith.addf %20, %22 : vector<16x32xf32>
      %c0_19 = arith.constant 0 : index
      %c0_20 = arith.constant 0 : index
      %24 = vector.load %arg2[%c0_19, %c0_20] : memref<16x32xbf16, #tpu.memory_space<vmem>>, vector<16x32xbf16>
      %25 = arith.extf %24 : vector<16x32xbf16> to vector<16x32xf32>
      %26 = arith.addf %23, %25 : vector<16x32xf32>
      %cst_21 = arith.constant dense<0.000000e+00> : vector<16xf32>
      %27 = vector.multi_reduction <add>, %26, %cst_21 [1] : vector<16x32xf32> to vector<16xf32>
      %28 = vector.shape_cast %27 : vector<16xf32> to vector<16x1xf32>
      %cst_22 = arith.constant 3.200000e+01 : f32
      %29 = vector.broadcast %cst_22 : f32 to vector<16x1xf32>
      %30 = arith.divf %28, %29 : vector<16x1xf32>
      %31 = vector.broadcast %30 : vector<16x1xf32> to vector<16x32xf32>
      %32 = arith.subf %26, %31 : vector<16x32xf32>
      %33 = arith.mulf %32, %32 : vector<16x32xf32>
      %cst_23 = arith.constant dense<0.000000e+00> : vector<16xf32>
      %34 = vector.multi_reduction <add>, %33, %cst_23 [1] : vector<16x32xf32> to vector<16xf32>
      %35 = vector.shape_cast %34 : vector<16xf32> to vector<16x1xf32>
      %cst_24 = arith.constant 3.200000e+01 : f32
      %36 = vector.broadcast %cst_24 : f32 to vector<16x1xf32>
      %37 = arith.divf %35, %36 : vector<16x1xf32>
      %38 = vector.broadcast %30 : vector<16x1xf32> to vector<16x32xf32>
      %39 = arith.subf %26, %38 : vector<16x32xf32>
      %cst_25 = arith.constant 9.99999974E-6 : f32
      %40 = vector.broadcast %cst_25 : f32 to vector<16x1xf32>
      %41 = arith.addf %37, %40 : vector<16x1xf32>
      %42 = math.rsqrt %41 : vector<16x1xf32>
      %43 = vector.broadcast %42 : vector<16x1xf32> to vector<16x32xf32>
      %44 = arith.mulf %39, %43 : vector<16x32xf32>
      %c0_26 = arith.constant 0 : index
      %c0_27 = arith.constant 0 : index
      %45 = vector.load %arg7[%c0_26, %c0_27] : memref<1x32xf32, #tpu.memory_space<vmem>>, vector<1x32xf32>
      %46 = vector.broadcast %45 : vector<1x32xf32> to vector<16x32xf32>
      %47 = arith.mulf %44, %46 : vector<16x32xf32>
      %c0_28 = arith.constant 0 : index
      %c0_29 = arith.constant 0 : index
      %48 = vector.load %arg8[%c0_28, %c0_29] : memref<1x32xf32, #tpu.memory_space<vmem>>, vector<1x32xf32>
      %49 = vector.broadcast %48 : vector<1x32xf32> to vector<16x32xf32>
      %50 = arith.addf %47, %49 : vector<16x32xf32>
      %51 = arith.truncf %50 : vector<16x32xf32> to vector<16x32xbf16>
      %c0_30 = arith.constant 0 : index
      %c0_31 = arith.constant 0 : index
      %52 = vector.load %arg9[%c0_30, %c0_31] : memref<16x32xbf16, #tpu.memory_space<vmem>>, vector<16x32xbf16>
      tpu.vector_store %arg9[%c0_30, %c0_31], %51 {strides = array<i32>} : memref<16x32xbf16, #tpu.memory_space<vmem>>, vector<16x32xbf16>,
    } else {
    }
    return
  }
  func.func @transform_0(%arg0: i32, %arg1: i32) -> (i32, i32) {
    %c0_i32 = arith.constant 0 : i32
    %c0_i32_0 = arith.constant 0 : i32
    return %arg0, %c0_i32 : i32, i32
  }
  func.func @transform_1(%arg0: i32, %arg1: i32) -> (i32, i32) {
    %c0_i32 = arith.constant 0 : i32
    %c0_i32_0 = arith.constant 0 : i32
    return %c0_i32, %arg1 : i32, i32
  }
  func.func @transform_2(%arg0: i32, %arg1: i32) -> (i32, i32) {
    %c0_i32 = arith.constant 0 : i32
    %c0_i32_0 = arith.constant 0 : i32
    return %c0_i32, %arg1 : i32, i32
  }
  func.func @transform_3(%arg0: i32, %arg1: i32) -> (i32, i32) {
    %c0_i32 = arith.constant 0 : i32
    %c0_i32_0 = arith.constant 0 : i32
    return %arg1, %c0_i32 : i32, i32
  }
  func.func @transform_4(%arg0: i32, %arg1: i32) -> (i32, i32) {
    %c0_i32 = arith.constant 0 : i32
    %c0_i32_0 = arith.constant 0 : i32
    %c0_i32_1 = arith.constant 0 : i32
    return %c0_i32, %c0_i32_0 : i32, i32
  }
  func.func @transform_5(%arg0: i32, %arg1: i32) -> (i32, i32) {
    %c0_i32 = arith.constant 0 : i32
    %c0_i32_0 = arith.constant 0 : i32
    %c0_i32_1 = arith.constant 0 : i32
    return %c0_i32, %c0_i32_0 : i32, i32
  }
  func.func @transform_6(%arg0: i32, %arg1: i32) -> (i32, i32) {
    %c0_i32 = arith.constant 0 : i32
    %c0_i32_0 = arith.constant 0 : i32
    %c0_i32_1 = arith.constant 0 : i32
    return %c0_i32, %c0_i32_0 : i32, i32
  }
  func.func @transform_7(%arg0: i32, %arg1: i32) -> (i32, i32) {
    %c0_i32 = arith.constant 0 : i32
    %c0_i32_0 = arith.constant 0 : i32
    return %arg0, %c0_i32 : i32, i32
  }
}

module attributes {stable_mosaic.version = 11 : i64} {
  func.func @_dense_kernel(%arg0: i32, %arg1: i32, %arg2: i32, %arg3: memref<8x32xbf16, #tpu.memory_space<vmem>>, %arg4: memref<32x128xbf16, #tpu.memory_space<vmem>>, %arg5: memref<1x128xf32, #tpu.memory_space<vmem>>, %arg6: memref<8x128xf32, #tpu.memory_space<vmem>>, %arg7: memref<8x128xf32, #tpu.memory_space<vmem>>) attributes {dimension_semantics = [#tpu.dimension_semantics<parallel>, #tpu.dimension_semantics<parallel>, #tpu.dimension_semantics<arbitrary>], iteration_bounds = array<i64: 1, 1, 1>, scalar_prefetch = 0 : i64, scratch_operands = 1 : i64, tpu.core_type = #tpu.core_type<tc>, window_params = [{transform_indices = @transform_0, window_bounds = array<i64: 8, 32>}, {transform_indices = @transform_1, window_bounds = array<i64: 32, 128>}, {transform_indices = @transform_2, window_bounds = array<i64: 1, 128>}, {transform_indices = @transform_3, window_bounds = array<i64: 8, 128>}]} {
    %c0_i32 = arith.constant 0 : i32
    %0 = arith.cmpi eq, %arg2, %c0_i32 : i32
    %1 = arith.extui %0 : i1 to i32
    %c0_i32_0 = arith.constant 0 : i32
    %2 = arith.cmpi ne, %1, %c0_i32_0 : i32
    scf.if %2 {
      %cst_10 = arith.constant 0.000000e+00 : f32
      %12 = vector.broadcast %cst_10 : f32 to vector<8x128xf32>
      %c0_11 = arith.constant 0 : index
      %c0_12 = arith.constant 0 : index
      %13 = vector.load %arg7[%c0_11, %c0_12] : memref<8x128xf32, #tpu.memory_space<vmem>>, vector<8x128xf32>
      tpu.vector_store %arg7[%c0_11, %c0_12], %12 {strides = array<i32>} : memref<8x128xf32, #tpu.memory_space<vmem>>, vector<8x128xf32>,
    } else {
    }
    %c0 = arith.constant 0 : index
    %c0_1 = arith.constant 0 : index
    %3 = vector.load %arg7[%c0, %c0_1] : memref<8x128xf32, #tpu.memory_space<vmem>>, vector<8x128xf32>
    %c0_2 = arith.constant 0 : index
    %c0_3 = arith.constant 0 : index
    %4 = vector.load %arg3[%c0_2, %c0_3] : memref<8x32xbf16, #tpu.memory_space<vmem>>, vector<8x32xbf16>
    %c0_4 = arith.constant 0 : index
    %c0_5 = arith.constant 0 : index
    %5 = vector.load %arg4[%c0_4, %c0_5] : memref<32x128xbf16, #tpu.memory_space<vmem>>, vector<32x128xbf16>
    %cst = arith.constant dense<0.000000e+00> : vector<8x128xf32>
    %6 = tpu.matmul %4, %5, %cst {dimension_numbers = #tpu.dot_dimension_numbers<[1], [0], [0], [1], [0, 0, 1, 1], [], []>} : vector<8x32xbf16>, vector<32x128xbf16>, vector<8x128xf32> -> vector<8x128xf32>
    %7 = arith.addf %3, %6 : vector<8x128xf32>
    %c0_6 = arith.constant 0 : index
    %c0_7 = arith.constant 0 : index
    %8 = vector.load %arg7[%c0_6, %c0_7] : memref<8x128xf32, #tpu.memory_space<vmem>>, vector<8x128xf32>
    tpu.vector_store %arg7[%c0_6, %c0_7], %7 {strides = array<i32>} : memref<8x128xf32, #tpu.memory_space<vmem>>, vector<8x128xf32>,
    %c0_i32_8 = arith.constant 0 : i32
    %9 = arith.cmpi eq, %arg2, %c0_i32_8 : i32
    %10 = arith.extui %9 : i1 to i32
    %c0_i32_9 = arith.constant 0 : i32
    %11 = arith.cmpi ne, %10, %c0_i32_9 : i32
    scf.if %11 {
      %c0_10 = arith.constant 0 : index
      %c0_11 = arith.constant 0 : index
      %12 = vector.load %arg7[%c0_10, %c0_11] : memref<8x128xf32, #tpu.memory_space<vmem>>, vector<8x128xf32>
      %c0_12 = arith.constant 0 : index
      %c0_13 = arith.constant 0 : index
      %13 = vector.load %arg5[%c0_12, %c0_13] : memref<1x128xf32, #tpu.memory_space<vmem>>, vector<1x128xf32>
      %14 = vector.broadcast %13 : vector<1x128xf32> to vector<8x128xf32>
      %15 = arith.addf %12, %14 : vector<8x128xf32>
      %c0_14 = arith.constant 0 : index
      %c0_15 = arith.constant 0 : index
      %16 = vector.load %arg6[%c0_14, %c0_15] : memref<8x128xf32, #tpu.memory_space<vmem>>, vector<8x128xf32>
      tpu.vector_store %arg6[%c0_14, %c0_15], %15 {strides = array<i32>} : memref<8x128xf32, #tpu.memory_space<vmem>>, vector<8x128xf32>,
    } else {
    }
    return
  }
  func.func @transform_0(%arg0: i32, %arg1: i32, %arg2: i32) -> (i32, i32) {
    %c0_i32 = arith.constant 0 : i32
    return %arg0, %arg2 : i32, i32
  }
  func.func @transform_1(%arg0: i32, %arg1: i32, %arg2: i32) -> (i32, i32) {
    %c0_i32 = arith.constant 0 : i32
    return %arg2, %arg1 : i32, i32
  }
  func.func @transform_2(%arg0: i32, %arg1: i32, %arg2: i32) -> (i32, i32) {
    %c0_i32 = arith.constant 0 : i32
    %c0_i32_0 = arith.constant 0 : i32
    return %c0_i32, %arg1 : i32, i32
  }
  func.func @transform_3(%arg0: i32, %arg1: i32, %arg2: i32) -> (i32, i32) {
    %c0_i32 = arith.constant 0 : i32
    return %arg0, %arg1 : i32, i32
  }
}

</mosaic_0001>

<llo_original>
// kernel: transformer_forward.11
$region0: #{transformer_forward.11}
  #allocation0 [shape = 'u32[]', space=smem, size = 0x4, offset = 0x4, fixed_abs, tag = 'smem constant byte address 0x4 - core index']
  #allocation1 [shape = 'u32[144,128]{1,0:T(1,128)}', space=vmem, size = 0x12000, scoped, tag = 'internal scratch']
  #allocation2 [shape = 'f32[16,96]{1,0:T(8,128)}', space=vmem, size = 0x2000, scoped, tag = 'scratch operand']
  %s0 = inlined_call_operand.vmem [shape: bf16[16,32], index: 0, kind: input, shape index: {}]
  %s1 = inlined_call_operand.vmem [shape: bf16[32,96], index: 1, kind: input, shape index: {}]
  %s2 = inlined_call_operand.vmem [shape: f32[1,96], index: 2, kind: input, shape index: {}]
  %s3 = inlined_call_operand.vmem [shape: bf16[16,96], index: 3, kind: output, shape index: {}]
  %s4 = sld [smem:[#allocation0]]
  $region30: #{transformer_forward.11} parent=0
    _
  %s6 = ssub.s32 1, %s4
  %s7 = scalar_select 0, %s6, %s4
  // Predicated region
  $region2: #{transformer_forward.11} parent=0 // pred_check
    _
  $region3: #{transformer_forward.11} parent=0 // pred_check_branch
    %9 = sbr.rel (0) target = $region5
  $region4: #{transformer_forward.11} parent=0 // pred_region
    _
  $region5: #{transformer_forward.11} parent=0 // pred_fallthru
    _
  // Predicated region
  $region6: #{transformer_forward.11} parent=0 // pred_check
    _
  $region7: #{transformer_forward.11} parent=0 // pred_check_branch
    %11 = sbr.rel (0) target = $region9
  $region8: #{transformer_forward.11} parent=0 // pred_region
    _
  $region9: #{transformer_forward.11} parent=0 // pred_fallthru
    _
  // Predicated region
  $region10: #{transformer_forward.11} parent=0 // pred_check
    _
  $region11: #{transformer_forward.11} parent=0 // pred_check_branch
    %13 = sbr.rel (0) target = $region13
  $region12: #{transformer_forward.11} parent=0 // pred_region
    _
  $region13: #{transformer_forward.11} parent=0 // pred_fallthru
    _
  %p15 = scmp.eq.s32.totalorder 0, 0
  // Predicated region
  $region14: #{transformer_forward.11} parent=0 // pred_check
    %p16 = pneg %p15
  $region15: #{transformer_forward.11} parent=0 // pred_check_branch
    %18 = sbr.rel (%p16) target = $region17
  $region16: #{transformer_forward.11} parent=0 // pred_region
    %vm19 = vcmask 785408
    %20 = vst.msk [vmem:[#allocation2] sm:$0xff] %vm19, 0.0
    %21 = vst.msk [vmem:[#allocation2 + $0x8] sm:$0xff] %vm19, 0.0
  $region17: #{transformer_forward.11} parent=0 // pred_fallthru
    _
  %v22 = vld [vmem:[#allocation2] sm:$0xff]
  %v23 = vld [vmem:[#allocation2 + $0x8] sm:$0xff]
  %v24 = vld [vmem:[%s0] sm:$0xf]
  %v25 = vld [vmem:[%s0 + $0x4] sm:$0xf]
  %v26 = vld [vmem:[%s1] sm:$0xf]
  %v27 = vld [vmem:[%s1 + $0x4] sm:$0xf]
  %v28 = vld [vmem:[%s1 + $0x8] sm:$0xf]
  %v29 = vld [vmem:[%s1 + $0xc] sm:$0xf]
  %v32 = vunpack.c.l.b16 %v24
  %v33 = vunpack.c.l.b16 %v25
  %v34 = vpack.c.b16 %v33, %v32
  %v39 = vunpack.c.l.b16 %v26
  %v40 = vunpack.c.l.b16 %v27
  %v41 = vunpack.c.l.b16 %v28
  %v42 = vunpack.c.l.b16 %v29
  %v43 = vpack.c.b16 %v40, %v39
  %v44 = vpack.c.b16 %v42, %v41
  %vm47 = vcmask 261120
  %v49 = vsel %vm47, %v34, 0
  %51 = vmatprep.subr.bf16.mxu0 0
  %52 = vmatpush1.bf16.msra.mxu0 0
  %53 = vmatprep.subr.bf16.mxu0 0
  %54 = vmatpush1.bf16.msra.mxu0 0
  %55 = vmatprep.subr.bf16.mxu0 0
  %56 = vmatpush1.bf16.msra.mxu0 0
  %57 = vmatprep.subr.bf16.mxu0 0
  %58 = vmatpush1.bf16.msra.mxu0 0
  %59 = vmatprep.subr.bf16.mxu0 0
  %60 = vmatpush1.bf16.msra.mxu0 0
  %61 = vmatprep.subr.bf16.mxu0 0
  %62 = vmatpush1.bf16.msra.mxu0 0
  %63 = vmatprep.subr.bf16.mxu0 0
  %64 = vmatpush1.bf16.msra.mxu0 %v44
  %65 = vmatprep.subr.bf16.mxu0 0
  %66 = vmatpush1.bf16.msra.mxu0 %v43
  %67 = vmatprep.subr.bf16.mxu0 0
  %68 = vmatpush2.bf16.msra.mxu0 0
  %69 = vmatprep.subr.bf16.mxu0 0
  %70 = vmatpush2.bf16.msra.mxu0 0
  %71 = vmatprep.subr.bf16.mxu0 0
  %72 = vmatpush2.bf16.msra.mxu0 0
  %73 = vmatprep.subr.bf16.mxu0 0
  %74 = vmatpush2.bf16.msra.mxu0 0
  %75 = vmatprep.subr.bf16.mxu0 0
  %76 = vmatpush2.bf16.msra.mxu0 0
  %77 = vmatprep.subr.bf16.mxu0 0
  %78 = vmatpush2.bf16.msra.mxu0 0
  %79 = vmatprep.subr.bf16.mxu0 0
  %80 = vmatpush2.bf16.msra.mxu0 0
  %81 = vmatprep.subr.bf16.mxu0 0
  %82 = vmatpush2.bf16.msra.mxu0 0
  %83 = vmatprep.mubr.bf16.mxu0 0
  %84 = vmatmul.mubr.bf16.gmra.mxu0 %v49
  %v85 = vpop.f32.mrf.mxu0
  %v86 = vadd.f32 0.0, %v85
  %v87 = vpop.f32.mrf.mxu0
  %v88 = vpop.f32.mrf.mxu0
  %v89 = vadd.f32 0.0, %v88
  %v90 = vpop.f32.mrf.mxu0
  %91 = vdwg.mxu0
  %v92 = vadd.f32 %v22, %v86
  %v93 = vadd.f32 %v23, %v89
  %vm94 = vcmask 785408
  %95 = vst.msk [vmem:[#allocation2] sm:$0xff] %vm94, %v92
  %96 = vst.msk [vmem:[#allocation2 + $0x8] sm:$0xff] %vm94, %v93
  // Predicated region
  $region18: #{transformer_forward.11} parent=0 // pred_check
    %p97 = pneg %p15
  $region19: #{transformer_forward.11} parent=0 // pred_check_branch
    %99 = sbr.rel (%p97) target = $region21
  $region20: #{transformer_forward.11} parent=0 // pred_region
    %v100 = vld [vmem:[#allocation2] sm:$0xff]
    %v101 = vld [vmem:[#allocation2 + $0x8] sm:$0xff]
    %v102 = vld [vmem:[%s2] sm:$0x1]
    %v104 = vlaneseq
    %v105 = vshrl.u32 %v104, 7
    %v106 = vsub.s32 0, %v105
    %v107 = vrot.slane %v102, %v106
    %v109 = vadd.f32 %v100, %v107
    %v110 = vadd.f32 %v101, %v107
    %v111 = vpack.c.bf16 %v110, %v109
    %v113 = vunpack.c.l.b16 %v111
    %v114 = vunpack.c.h.b16 %v111
    %v115 = vpack.c.b16 %v113, %v113
    %v116 = vpack.c.b16 %v114, %v114
    %vm119 = vcmask 781312
    %120 = vst.msk [vmem:[%s3] sm:$0xf] %vm119, %v115
    %121 = vst.msk [vmem:[%s3 + $0x4] sm:$0xf] %vm119, %v116
  $region21: #{transformer_forward.11} parent=0 // pred_fallthru
    _
  // Predicated region
  $region22: #{transformer_forward.11} parent=0 // pred_check
    _
  $region23: #{transformer_forward.11} parent=0 // pred_check_branch
    %123 = sbr.rel (0) target = $region25
  $region24: #{transformer_forward.11} parent=0 // pred_region
    _
  $region25: #{transformer_forward.11} parent=0 // pred_fallthru
    _
  // Predicated region
  $region26: #{transformer_forward.11} parent=0 // pred_check
    _
  $region27: #{transformer_forward.11} parent=0 // pred_check_branch
    %125 = sbr.rel (0) target = $region29
  $region28: #{transformer_forward.11} parent=0 // pred_region
    _
  $region29: #{transformer_forward.11} parent=0 // pred_fallthru
    _

// kernel: transformer_forward.10
$region0: #{transformer_forward.10}
  #allocation0 [shape = 'u32[]', space=smem, size = 0x4, offset = 0x4, fixed_abs, tag = 'smem constant byte address 0x4 - core index']
  #allocation1 [shape = 'u32[144,128]{1,0:T(1,128)}', space=vmem, size = 0x12000, scoped, tag = 'internal scratch']
  #allocation2 [shape = 'f32[16,32]{1,0:T(8,128)}', space=vmem, size = 0x2000, scoped, tag = 'scratch operand']
  %s0 = inlined_call_operand.vmem [shape: f32[16,128], index: 0, kind: input, shape index: {}]
  %s1 = inlined_call_operand.vmem [shape: bf16[128,32], index: 1, kind: input, shape index: {}]
  %s2 = inlined_call_operand.vmem [shape: f32[1,32], index: 2, kind: input, shape index: {}]
  %s3 = inlined_call_operand.vmem [shape: bf16[16,32], index: 3, kind: output, shape index: {}]
  %s4 = sld [smem:[#allocation0]]
  $region30: #{transformer_forward.10} parent=0
    _
  %s6 = ssub.s32 1, %s4
  %s7 = scalar_select 0, %s6, %s4
  // Predicated region
  $region2: #{transformer_forward.10} parent=0 // pred_check
    _
  $region3: #{transformer_forward.10} parent=0 // pred_check_branch
    %9 = sbr.rel (0) target = $region5
  $region4: #{transformer_forward.10} parent=0 // pred_region
    _
  $region5: #{transformer_forward.10} parent=0 // pred_fallthru
    _
  // Predicated region
  $region6: #{transformer_forward.10} parent=0 // pred_check
    _
  $region7: #{transformer_forward.10} parent=0 // pred_check_branch
    %11 = sbr.rel (0) target = $region9
  $region8: #{transformer_forward.10} parent=0 // pred_region
    _
  $region9: #{transformer_forward.10} parent=0 // pred_fallthru
    _
  // Predicated region
  $region10: #{transformer_forward.10} parent=0 // pred_check
    _
  $region11: #{transformer_forward.10} parent=0 // pred_check_branch
    %13 = sbr.rel (0) target = $region13
  $region12: #{transformer_forward.10} parent=0 // pred_region
    _
  $region13: #{transformer_forward.10} parent=0 // pred_fallthru
    _
  %p15 = scmp.eq.s32.totalorder 0, 0
  // Predicated region
  $region14: #{transformer_forward.10} parent=0 // pred_check
    %p16 = pneg %p15
  $region15: #{transformer_forward.10} parent=0 // pred_check_branch
    %18 = sbr.rel (%p16) target = $region17
  $region16: #{transformer_forward.10} parent=0 // pred_region
    %vm19 = vcmask 261120
    %20 = vst.msk [vmem:[#allocation2] sm:$0xff] %vm19, 0.0
    %21 = vst.msk [vmem:[#allocation2 + $0x8] sm:$0xff] %vm19, 0.0
  $region17: #{transformer_forward.10} parent=0 // pred_fallthru
    _
  %v22 = vld [vmem:[#allocation2] sm:$0xff]
  %v23 = vld [vmem:[#allocation2 + $0x8] sm:$0xff]
  %v24 = vld [vmem:[%s0] sm:$0xff]
  %v25 = vld [vmem:[%s0 + $0x8] sm:$0xff]
  %v26 = vpack.c.bf16 %v25, %v24
  %v27 = vld [vmem:[%s1] sm:$0xf]
  %v28 = vld [vmem:[%s1 + $0x4] sm:$0xf]
  %v29 = vld [vmem:[%s1 + $0x8] sm:$0xf]
  %v30 = vld [vmem:[%s1 + $0xc] sm:$0xf]
  %v31 = vld [vmem:[%s1 + $0x10] sm:$0xf]
  %v32 = vld [vmem:[%s1 + $0x14] sm:$0xf]
  %v33 = vld [vmem:[%s1 + $0x18] sm:$0xf]
  %v34 = vld [vmem:[%s1 + $0x1c] sm:$0xf]
  %v35 = vld [vmem:[%s1 + $0x20] sm:$0xf]
  %v36 = vld [vmem:[%s1 + $0x24] sm:$0xf]
  %v37 = vld [vmem:[%s1 + $0x28] sm:$0xf]
  %v38 = vld [vmem:[%s1 + $0x2c] sm:$0xf]
  %v39 = vld [vmem:[%s1 + $0x30] sm:$0xf]
  %v40 = vld [vmem:[%s1 + $0x34] sm:$0xf]
  %v41 = vld [vmem:[%s1 + $0x38] sm:$0xf]
  %v42 = vld [vmem:[%s1 + $0x3c] sm:$0xf]
  %v59 = vunpack.c.l.b16 %v27
  %v60 = vunpack.c.l.b16 %v28
  %v61 = vunpack.c.l.b16 %v29
  %v62 = vunpack.c.l.b16 %v30
  %v63 = vunpack.c.l.b16 %v31
  %v64 = vunpack.c.l.b16 %v32
  %v65 = vunpack.c.l.b16 %v33
  %v66 = vunpack.c.l.b16 %v34
  %v67 = vunpack.c.l.b16 %v35
  %v68 = vunpack.c.l.b16 %v36
  %v69 = vunpack.c.l.b16 %v37
  %v70 = vunpack.c.l.b16 %v38
  %v71 = vunpack.c.l.b16 %v39
  %v72 = vunpack.c.l.b16 %v40
  %v73 = vunpack.c.l.b16 %v41
  %v74 = vunpack.c.l.b16 %v42
  %v75 = vpack.c.b16 %v60, %v59
  %v76 = vpack.c.b16 %v62, %v61
  %v77 = vpack.c.b16 %v64, %v63
  %v78 = vpack.c.b16 %v66, %v65
  %v79 = vpack.c.b16 %v68, %v67
  %v80 = vpack.c.b16 %v70, %v69
  %v81 = vpack.c.b16 %v72, %v71
  %v82 = vpack.c.b16 %v74, %v73
  %91 = vmatprep.subr.bf16.mxu0 0
  %92 = vmatpush1.bf16.msra.mxu0 %v82
  %93 = vmatprep.subr.bf16.mxu0 0
  %94 = vmatpush1.bf16.msra.mxu0 %v81
  %95 = vmatprep.subr.bf16.mxu0 0
  %96 = vmatpush1.bf16.msra.mxu0 %v80
  %97 = vmatprep.subr.bf16.mxu0 0
  %98 = vmatpush1.bf16.msra.mxu0 %v79
  %99 = vmatprep.subr.bf16.mxu0 0
  %100 = vmatpush1.bf16.msra.mxu0 %v78
  %101 = vmatprep.subr.bf16.mxu0 0
  %102 = vmatpush1.bf16.msra.mxu0 %v77
  %103 = vmatprep.subr.bf16.mxu0 0
  %104 = vmatpush1.bf16.msra.mxu0 %v76
  %105 = vmatprep.subr.bf16.mxu0 0
  %106 = vmatpush1.bf16.msra.mxu0 %v75
  %107 = vmatprep.subr.bf16.mxu0 0
  %108 = vmatpush2.bf16.msra.mxu0 0
  %109 = vmatprep.subr.bf16.mxu0 0
  %110 = vmatpush2.bf16.msra.mxu0 0
  %111 = vmatprep.subr.bf16.mxu0 0
  %112 = vmatpush2.bf16.msra.mxu0 0
  %113 = vmatprep.subr.bf16.mxu0 0
  %114 = vmatpush2.bf16.msra.mxu0 0
  %115 = vmatprep.subr.bf16.mxu0 0
  %116 = vmatpush2.bf16.msra.mxu0 0
  %117 = vmatprep.subr.bf16.mxu0 0
  %118 = vmatpush2.bf16.msra.mxu0 0
  %119 = vmatprep.subr.bf16.mxu0 0
  %120 = vmatpush2.bf16.msra.mxu0 0
  %121 = vmatprep.subr.bf16.mxu0 0
  %122 = vmatpush2.bf16.msra.mxu0 0
  %123 = vmatprep.mubr.bf16.mxu0 0
  %124 = vmatmul.mubr.bf16.gmra.mxu0 %v26
  %v125 = vpop.f32.mrf.mxu0
  %v126 = vadd.f32 0.0, %v125
  %v127 = vpop.f32.mrf.mxu0
  %v128 = vpop.f32.mrf.mxu0
  %v129 = vadd.f32 0.0, %v128
  %v130 = vpop.f32.mrf.mxu0
  %131 = vdwg.mxu0
  %v132 = vadd.f32 %v22, %v126
  %v133 = vadd.f32 %v23, %v129
  %vm134 = vcmask 261120
  %135 = vst.msk [vmem:[#allocation2] sm:$0xff] %vm134, %v132
  %136 = vst.msk [vmem:[#allocation2 + $0x8] sm:$0xff] %vm134, %v133
  // Predicated region
  $region18: #{transformer_forward.10} parent=0 // pred_check
    %p137 = pneg %p15
  $region19: #{transformer_forward.10} parent=0 // pred_check_branch
    %139 = sbr.rel (%p137) target = $region21
  $region20: #{transformer_forward.10} parent=0 // pred_region
    %v140 = vld [vmem:[#allocation2] sm:$0xff]
    %v141 = vld [vmem:[#allocation2 + $0x8] sm:$0xff]
    %v142 = vld [vmem:[%s2] sm:$0x1]
    %v144 = vlaneseq
    %v145 = vshrl.u32 %v144, 7
    %v146 = vsub.s32 0, %v145
    %v147 = vrot.slane %v142, %v146
    %v149 = vadd.f32 %v140, %v147
    %v150 = vadd.f32 %v141, %v147
    %v151 = vpack.c.bf16 %v150, %v149
    %v153 = vunpack.c.l.b16 %v151
    %v154 = vunpack.c.h.b16 %v151
    %v155 = vpack.c.b16 %v153, %v153
    %v156 = vpack.c.b16 %v154, %v154
    %vm159 = vcmask 257024
    %160 = vst.msk [vmem:[%s3] sm:$0xf] %vm159, %v155
    %161 = vst.msk [vmem:[%s3 + $0x4] sm:$0xf] %vm159, %v156
  $region21: #{transformer_forward.10} parent=0 // pred_fallthru
    _
  // Predicated region
  $region22: #{transformer_forward.10} parent=0 // pred_check
    _
  $region23: #{transformer_forward.10} parent=0 // pred_check_branch
    %163 = sbr.rel (0) target = $region25
  $region24: #{transformer_forward.10} parent=0 // pred_region
    _
  $region25: #{transformer_forward.10} parent=0 // pred_fallthru
    _
  // Predicated region
  $region26: #{transformer_forward.10} parent=0 // pred_check
    _
  $region27: #{transformer_forward.10} parent=0 // pred_check_branch
    %165 = sbr.rel (0) target = $region29
  $region28: #{transformer_forward.10} parent=0 // pred_region
    _
  $region29: #{transformer_forward.10} parent=0 // pred_fallthru
    _

// kernel: transformer_forward.12
$region0: #{transformer_forward.12}
  #allocation0 [shape = 'u32[]', space=smem, size = 0x4, offset = 0x4, fixed_abs, tag = 'smem constant byte address 0x4 - core index']
  #allocation1 [shape = 'u32[144,128]{1,0:T(1,128)}', space=vmem, size = 0x12000, scoped, tag = 'internal scratch']
  #allocation2 [shape = 'f32[8,1]{1,0:T(8,128)}', space=vmem, size = 0x1000, scoped, tag = 'scratch operand']
  #allocation3 [shape = 'f32[8,1]{1,0:T(8,128)}', space=vmem, size = 0x1000, scoped, tag = 'scratch operand']
  #allocation4 [shape = 'f32[8,4]{1,0:T(8,128)}', space=vmem, size = 0x1000, scoped, tag = 'scratch operand']
  %s0 = inlined_call_operand.vmem [shape: bf16[16,8,4], index: 0, kind: input, shape index: {}]
  %s1 = inlined_call_operand.vmem [shape: bf16[16,8,4], index: 1, kind: input, shape index: {}]
  %s2 = inlined_call_operand.vmem [shape: bf16[16,8,4], index: 2, kind: input, shape index: {}]
  %s3 = inlined_call_operand.vmem [shape: bf16[16,8,4], index: 3, kind: output, shape index: {}]
  %s4 = sld [smem:[#allocation0]]
  $region53: #{transformer_forward.12} parent=0
    _
  %s6 = ssub.s32 1, %s4
  %s7 = scalar_select 0, %s6, %s4
  loop: start=0, step=1, limit=18
  $region2: #{transformer_forward.12} parent=0 // loop_pre_header
    _
  $region3: #{transformer_forward.12} parent=0 // loop_header
    %s9 = sphi 0, %s13
    %p10 = scmp.ge.s32.totalorder %s9, 18
    %s16 = sphi 0, %s35
    %s17 = sphi 0, %s31
    %s18 = sphi 0, %s27
    %s19 = sphi 0, %s16
    %s20 = sphi 0, %s17
    %s21 = sphi 0, %s18
    %s22 = sphi 0, %s19
    %s23 = sphi 0, %s20
    %s24 = sphi 0, %s21
    %s40 = sphi 0, %s42
    %s43 = sphi 0, %s40
    %s44 = sphi 0, %s43
    %s60 = sphi 0, %s44
    %s68 = sphi 0, %s70
    %s71 = sphi 0, %s68
    %s72 = sphi 0, %s71
    %s88 = sphi 0, %s72
    %s96 = sphi 0, %s98
    %s99 = sphi 0, %s96
    %s100 = sphi 0, %s99
    %s116 = sphi 0, %s100
    %s124 = sphi 0, %s126
    %s127 = sphi 0, %s124
    %s128 = sphi 0, %s127
    %s144 = sphi 0, %s128
  $region4: #{transformer_forward.12} parent=0 // loop_header_branch
    %12 = sbr.rel (%p10) target = $region8
  $region5: #{transformer_forward.12} parent=0 // loop_body
    %s14 = ssub.s32 %s9, 1
    %s15 = ssub.s32 %s9, 2
    %s25 = sadd.s32 1, %s18
    %p26 = scmp.ge.s32.totalorder %s25, 1
    %s27 = scalar_select %p26, 0, %s25
    %s28 = sadd.s32 1, %s17
    %s29 = scalar_select %p26, %s28, %s17
    %p30 = scmp.ge.s32.totalorder %s29, 1
    %s31 = scalar_select %p30, 0, %s29
    %s32 = sadd.s32 1, %s16
    %s33 = scalar_select %p30, %s32, %s16
    %p34 = scmp.ge.s32.totalorder %s33, 16
    %s35 = scalar_select %p34, 0, %s33
    %s36 = ssub.s32 %s16, %s35
    %s37 = ssub.s32 %s17, %s31
    %s38 = sor.u32 %s36, %s37
    %p39 = scmp.eq.s32.totalorder %s38, 0
    %s41 = sadd.s32 %s40, 1
    %s42 = scalar_select %p39, %s40, %s41
    %p45 = pneg %p39
    %p46 = scmp.eq.s32.totalorder %s9, 15
    %p47 = por %p45, %p46
    %p48 = scmp.ne.s32.totalorder %s40, %s43
    %p49 = scmp.eq.s32.totalorder %s9, 0
    %p50 = por %p48, %p49
    %p51 = scmp.ne.s32.totalorder %s40, %s43
    %p52 = scmp.eq.s32.totalorder %s14, 15
    %p53 = por %p51, %p52
    %p54 = scmp.ne.s32.totalorder %s43, %s44
    %p55 = scmp.eq.s32.totalorder %s14, 0
    %p56 = por %p54, %p55
    %p57 = scmp.ne.s32.totalorder %s43, %s44
    %p58 = scmp.eq.s32.totalorder %s15, 15
    %p59 = por %p57, %p58
    %p61 = scmp.ne.s32.totalorder %s44, %s60
    %p62 = scmp.eq.s32.totalorder %s15, 0
    %p63 = por %p61, %p62
    %s64 = ssub.s32 %s16, %s35
    %s65 = ssub.s32 %s18, %s27
    %s66 = sor.u32 %s64, %s65
    %p67 = scmp.eq.s32.totalorder %s66, 0
    %s69 = sadd.s32 %s68, 1
    %s70 = scalar_select %p67, %s68, %s69
    %p73 = pneg %p67
    %p74 = scmp.eq.s32.totalorder %s9, 15
    %p75 = por %p73, %p74
    %p76 = scmp.ne.s32.totalorder %s68, %s71
    %p77 = scmp.eq.s32.totalorder %s9, 0
    %p78 = por %p76, %p77
    %p79 = scmp.ne.s32.totalorder %s68, %s71
    %p80 = scmp.eq.s32.totalorder %s14, 15
    %p81 = por %p79, %p80
    %p82 = scmp.ne.s32.totalorder %s71, %s72
    %p83 = scmp.eq.s32.totalorder %s14, 0
    %p84 = por %p82, %p83
    %p85 = scmp.ne.s32.totalorder %s71, %s72
    %p86 = scmp.eq.s32.totalorder %s15, 15
    %p87 = por %p85, %p86
    %p89 = scmp.ne.s32.totalorder %s72, %s88
    %p90 = scmp.eq.s32.totalorder %s15, 0
    %p91 = por %p89, %p90
    %s92 = ssub.s32 %s16, %s35
    %s93 = ssub.s32 %s18, %s27
    %s94 = sor.u32 %s92, %s93
    %p95 = scmp.eq.s32.totalorder %s94, 0
    %s97 = sadd.s32 %s96, 1
    %s98 = scalar_select %p95, %s96, %s97
    %p101 = pneg %p95
    %p102 = scmp.eq.s32.totalorder %s9, 15
    %p103 = por %p101, %p102
    %p104 = scmp.ne.s32.totalorder %s96, %s99
    %p105 = scmp.eq.s32.totalorder %s9, 0
    %p106 = por %p104, %p105
    %p107 = scmp.ne.s32.totalorder %s96, %s99
    %p108 = scmp.eq.s32.totalorder %s14, 15
    %p109 = por %p107, %p108
    %p110 = scmp.ne.s32.totalorder %s99, %s100
    %p111 = scmp.eq.s32.totalorder %s14, 0
    %p112 = por %p110, %p111
    %p113 = scmp.ne.s32.totalorder %s99, %s100
    %p114 = scmp.eq.s32.totalorder %s15, 15
    %p115 = por %p113, %p114
    %p117 = scmp.ne.s32.totalorder %s100, %s116
    %p118 = scmp.eq.s32.totalorder %s15, 0
    %p119 = por %p117, %p118
    %s120 = ssub.s32 %s16, %s35
    %s121 = ssub.s32 %s17, %s31
    %s122 = sor.u32 %s120, %s121
    %p123 = scmp.eq.s32.totalorder %s122, 0
    %s125 = sadd.s32 %s124, 1
    %s126 = scalar_select %p123, %s124, %s125
    %p129 = pneg %p123
    %p130 = scmp.eq.s32.totalorder %s9, 15
    %p131 = por %p129, %p130
    %p132 = scmp.ne.s32.totalorder %s124, %s127
    %p133 = scmp.eq.s32.totalorder %s9, 0
    %p134 = por %p132, %p133
    %p135 = scmp.ne.s32.totalorder %s124, %s127
    %p136 = scmp.eq.s32.totalorder %s14, 15
    %p137 = por %p135, %p136
    %p138 = scmp.ne.s32.totalorder %s127, %s128
    %p139 = scmp.eq.s32.totalorder %s14, 0
    %p140 = por %p138, %p139
    %p141 = scmp.ne.s32.totalorder %s127, %s128
    %p142 = scmp.eq.s32.totalorder %s15, 15
    %p143 = por %p141, %p142
    %p145 = scmp.ne.s32.totalorder %s128, %s144
    %p146 = scmp.eq.s32.totalorder %s15, 0
    %p147 = por %p145, %p146
    %p148 = scmp.le.s32.totalorder 1, %s9
    %p149 = scmp.lt.s32.totalorder %s9, 17
    %p150 = pnand %p148, %p149
    %p151 = pneg %p150
    // Predicated region
    $region9: #{transformer_forward.12} parent=5 // pred_check
      _
    $region10: #{transformer_forward.12} parent=5 // pred_check_branch
      %153 = sbr.rel (%p150) target = $region12
    $region11: #{transformer_forward.12} parent=5 // pred_region
      %s154 = ssub.s32 %s9, 1
    $region12: #{transformer_forward.12} parent=5 // pred_fallthru
      _
    %p155 = scmp.lt.s32.totalorder %s9, 16
    // Predicated region
    $region13: #{transformer_forward.12} parent=5 // pred_check
      %p156 = pneg %p155
    $region14: #{transformer_forward.12} parent=5 // pred_check_branch
      %158 = sbr.rel (%p156) target = $region16
    $region15: #{transformer_forward.12} parent=5 // pred_region
      // Predicated region
      $region17: #{transformer_forward.12} parent=15 // pred_check
        %p159 = pneg %p50
      $region18: #{transformer_forward.12} parent=15 // pred_check_branch
        %161 = sbr.rel (%p159) target = $region20
      $region19: #{transformer_forward.12} parent=15 // pred_region
        %p162 = scmp.lt.s32.totalorder %s16, 15
        %s163 = scalar_select %p162, %s16, 15
        %p164 = scmp.lt.s32.totalorder %s17, 0
        %s165 = scalar_select %p164, %s17, 0
        %s166 = sadd.s32 %s165, %s163
        %s167 = smul.addr %s166, 4
        %s168 = scalar_lea.vmem %s0, %s167
      $region20: #{transformer_forward.12} parent=15 // pred_fallthru
        _
      // Predicated region
      $region21: #{transformer_forward.12} parent=15 // pred_check
        %p169 = pneg %p78
      $region22: #{transformer_forward.12} parent=15 // pred_check_branch
        %171 = sbr.rel (%p169) target = $region24
      $region23: #{transformer_forward.12} parent=15 // pred_region
        %p172 = scmp.lt.s32.totalorder %s16, 15
        %s173 = scalar_select %p172, %s16, 15
        %p174 = scmp.lt.s32.totalorder %s18, 0
        %s175 = scalar_select %p174, %s18, 0
        %s176 = sadd.s32 %s175, %s173
        %s177 = smul.addr %s176, 4
        %s178 = scalar_lea.vmem %s1, %s177
      $region24: #{transformer_forward.12} parent=15 // pred_fallthru
        _
      // Predicated region
      $region25: #{transformer_forward.12} parent=15 // pred_check
        %p179 = pneg %p106
      $region26: #{transformer_forward.12} parent=15 // pred_check_branch
        %181 = sbr.rel (%p179) target = $region28
      $region27: #{transformer_forward.12} parent=15 // pred_region
        %p182 = scmp.lt.s32.totalorder %s16, 15
        %s183 = scalar_select %p182, %s16, 15
        %p184 = scmp.lt.s32.totalorder %s18, 0
        %s185 = scalar_select %p184, %s18, 0
        %s186 = sadd.s32 %s185, %s183
        %s187 = smul.addr %s186, 4
        %s188 = scalar_lea.vmem %s2, %s187
      $region28: #{transformer_forward.12} parent=15 // pred_fallthru
        _
    $region16: #{transformer_forward.12} parent=5 // pred_fallthru
      _
    %p189 = scmp.le.s32.totalorder 1, %s9
    %p190 = scmp.lt.s32.totalorder %s9, 17
    %p191 = pnand %p189, %p190
    %p192 = pneg %p191
    // Predicated region
    $region29: #{transformer_forward.12} parent=5 // pred_check
      _
    $region30: #{transformer_forward.12} parent=5 // pred_check_branch
      %194 = sbr.rel (%p191) target = $region32
    $region31: #{transformer_forward.12} parent=5 // pred_region
      %s195 = ssub.s32 %s9, 1
      %p196 = scmp.lt.s32.totalorder %s19, 15
      %s197 = scalar_select %p196, %s19, 15
      %p198 = scmp.lt.s32.totalorder %s20, 0
      %s199 = scalar_select %p198, %s20, 0
      %s200 = sadd.s32 %s199, %s197
      %s201 = smul.addr %s200, 4
      %s202 = scalar_lea.vmem %s0, %s201
      %p203 = pneg %p56
      %p204 = pneg %p53
      %p205 = scmp.lt.s32.totalorder %s19, 15
      %s206 = scalar_select %p205, %s19, 15
      %p207 = scmp.lt.s32.totalorder %s21, 0
      %s208 = scalar_select %p207, %s21, 0
      %s209 = sadd.s32 %s208, %s206
      %s210 = smul.addr %s209, 4
      %s211 = scalar_lea.vmem %s1, %s210
      %p212 = pneg %p84
      %p213 = pneg %p81
      %p214 = scmp.lt.s32.totalorder %s19, 15
      %s215 = scalar_select %p214, %s19, 15
      %p216 = scmp.lt.s32.totalorder %s21, 0
      %s217 = scalar_select %p216, %s21, 0
      %s218 = sadd.s32 %s217, %s215
      %s219 = smul.addr %s218, 4
      %s220 = scalar_lea.vmem %s2, %s219
      %p221 = pneg %p112
      %p222 = pneg %p109
      %p223 = pneg %p140
      %p224 = pneg %p137
      %p225 = scmp.lt.s32.totalorder %s19, 15
      %s226 = scalar_select %p225, %s19, 15
      %p227 = scmp.lt.s32.totalorder %s20, 0
      %s228 = scalar_select %p227, %s20, 0
      %s229 = sadd.s32 %s228, %s226
      %s230 = smul.addr %s229, 4
      %s231 = scalar_lea.vmem %s3, %s230
      %p232 = scmp.lt.s32.totalorder %s19, 15
      %s233 = scalar_select %p232, %s19, 15
      %p234 = scmp.lt.s32.totalorder %s20, 0
      %s235 = scalar_select %p234, %s20, 0
      %s236 = sadd.s32 %s235, %s233
      %s237 = smul.addr %s236, 4
      %s238 = scalar_lea.vmem %s0, %s237
      %p239 = scmp.lt.s32.totalorder %s19, 15
      %s240 = scalar_select %p239, %s19, 15
      %p241 = scmp.lt.s32.totalorder %s21, 0
      %s242 = scalar_select %p241, %s21, 0
      %s243 = sadd.s32 %s242, %s240
      %s244 = smul.addr %s243, 4
      %s245 = scalar_lea.vmem %s1, %s244
      %p246 = scmp.lt.s32.totalorder %s19, 15
      %s247 = scalar_select %p246, %s19, 15
      %p248 = scmp.lt.s32.totalorder %s21, 0
      %s249 = scalar_select %p248, %s21, 0
      %s250 = sadd.s32 %s249, %s247
      %s251 = smul.addr %s250, 4
      %s252 = scalar_lea.vmem %s2, %s251
      %p253 = scmp.lt.s32.totalorder %s19, 15
      %s254 = scalar_select %p253, %s19, 15
      %p255 = scmp.lt.s32.totalorder %s20, 0
      %s256 = scalar_select %p255, %s20, 0
      %s257 = sadd.s32 %s256, %s254
      %s258 = smul.addr %s257, 4
      %s259 = scalar_lea.vmem %s3, %s258
      %p261 = scmp.eq.s32.totalorder %s21, 0
      // Predicated region
      $region33: #{transformer_forward.12} parent=31 // pred_check
        %p262 = pneg %p261
      $region34: #{transformer_forward.12} parent=31 // pred_check_branch
        %264 = sbr.rel (%p262) target = $region36
      $region35: #{transformer_forward.12} parent=31 // pred_region
        %vm265 = vcmask 7168
        %266 = vst.msk [vmem:[#allocation2] sm:$0xff] %vm265, -inf
        %267 = vst.msk [vmem:[#allocation3] sm:$0xff] %vm265, 0.0
        %vm268 = vcmask 31744
        %269 = vst.msk [vmem:[#allocation4] sm:$0xff] %vm268, 0.0
      $region36: #{transformer_forward.12} parent=31 // pred_fallthru
        _
      %v270 = vld [vmem:[%s238] sm:$0xf]
      %v271 = vld [vmem:[%s245] sm:$0xf]
      %v272 = vld [vmem:[%s252] sm:$0xf]
      %vm273 = vcmask 31744
      %v275 = vsel %vm273, %v270, 0
      %v278 = vsel %vm273, %v271, 0
      %280 = vmatprep.subr.bf16.mxu0 0
      %281 = vmatpush1.bf16.xpose.msra.mxu0 0
      %282 = vmatprep.subr.bf16.mxu0 0
      %283 = vmatpush1.bf16.xpose.msra.mxu0 0
      %284 = vmatprep.subr.bf16.mxu0 0
      %285 = vmatpush1.bf16.xpose.msra.mxu0 0
      %286 = vmatprep.subr.bf16.mxu0 0
      %287 = vmatpush1.bf16.xpose.msra.mxu0 0
      %288 = vmatprep.subr.bf16.mxu0 0
      %289 = vmatpush1.bf16.xpose.msra.mxu0 0
      %290 = vmatprep.subr.bf16.mxu0 0
      %291 = vmatpush1.bf16.xpose.msra.mxu0 0
      %292 = vmatprep.subr.bf16.mxu0 0
      %293 = vmatpush1.bf16.xpose.msra.mxu0 0
      %294 = vmatprep.subr.bf16.mxu0 0
      %295 = vmatpush1.bf16.xpose.msra.mxu0 %v278
      %296 = vmatprep.subr.bf16.mxu0 0
      %297 = vmatpush2.bf16.xpose.msra.mxu0 0
      %298 = vmatprep.subr.bf16.mxu0 0
      %299 = vmatpush2.bf16.xpose.msra.mxu0 0
      %300 = vmatprep.subr.bf16.mxu0 0
      %301 = vmatpush2.bf16.xpose.msra.mxu0 0
      %302 = vmatprep.subr.bf16.mxu0 0
      %303 = vmatpush2.bf16.xpose.msra.mxu0 0
      %304 = vmatprep.subr.bf16.mxu0 0
      %305 = vmatpush2.bf16.xpose.msra.mxu0 0
      %306 = vmatprep.subr.bf16.mxu0 0
      %307 = vmatpush2.bf16.xpose.msra.mxu0 0
      %308 = vmatprep.subr.bf16.mxu0 0
      %309 = vmatpush2.bf16.xpose.msra.mxu0 0
      %310 = vmatprep.subr.bf16.mxu0 0
      %311 = vmatpush2.bf16.xpose.msra.mxu0 0
      %312 = vmatprep.mubr.bf16.mxu0 0
      %313 = vmatmul.mubr.bf16.gmra.mxu0 %v275
      %v314 = vpop.f32.mrf.mxu0
      %v315 = vadd.f32 0.0, %v314
      %v316 = vpop.f32.mrf.mxu0
      %v317 = vpop.f32.mrf.mxu0
      %v318 = vpop.f32.mrf.mxu0
      %319 = vdwg.mxu0
      %v320 = vld [vmem:[#allocation2] sm:$0xff]
      %vm321 = vcmask 64512
      %v322 = vsel %vm321, %v315, -inf
      %323 = vmax.xlane.f32.xlu0 %v322
      %v324 = vpop.xlane.xlu0 %323
      %v325 = vmax.f32 %v320, %v324
      %v326 = vsub.f32 %v320, %v325
      %v327 = vmul.f32 %v326, 1.442695
      %v328 = vpow.pop %v327
      %330 = vset.pattern.permute.xlu0 0
      %331 = vperm.xlu0 %330, %v325
      %v332 = vpop.permute.xlu0 %331
      %v334 = vsub.f32 %v315, %v332
      %v335 = vmul.f32 %v334, 1.442695
      %v336 = vpow.pop %v335
      %v337 = vld [vmem:[#allocation3] sm:$0xff]
      %v338 = vmul.f32 %v328, %v337
      %v339 = vsel %vm321, %v336, 0.0
      %340 = vadd.xlane.f32.xlu0 %v339
      %v341 = vpop.xlane.xlu0 %340
      %v342 = vadd.f32 %v338, %v341
      %vm343 = vcmask 7168
      %344 = vst.msk [vmem:[#allocation3] sm:$0xff] %vm343, %v342
      %v345 = vld [vmem:[#allocation4] sm:$0xff]
      %347 = vset.pattern.permute.xlu0 0
      %348 = vperm.xlu0 %347, %v328
      %v349 = vpop.permute.xlu0 %348
      %v351 = vmul.f32 %v349, %v345
      %v352 = vpack.c.bf16 %v336, %v336
      %v354 = vsel %vm321, %v352, 0
      %vm356 = vcmask 1043456
      %v358 = vsel %vm356, %v272, 0
      %360 = vmatprep.subr.bf16.mxu0 0
      %361 = vmatpush1.bf16.msra.mxu0 0
      %362 = vmatprep.subr.bf16.mxu0 0
      %363 = vmatpush1.bf16.msra.mxu0 0
      %364 = vmatprep.subr.bf16.mxu0 0
      %365 = vmatpush1.bf16.msra.mxu0 0
      %366 = vmatprep.subr.bf16.mxu0 0
      %367 = vmatpush1.bf16.msra.mxu0 0
      %368 = vmatprep.subr.bf16.mxu0 0
      %369 = vmatpush1.bf16.msra.mxu0 0
      %370 = vmatprep.subr.bf16.mxu0 0
      %371 = vmatpush1.bf16.msra.mxu0 0
      %372 = vmatprep.subr.bf16.mxu0 0
      %373 = vmatpush1.bf16.msra.mxu0 0
      %374 = vmatprep.subr.bf16.mxu0 0
      %375 = vmatpush1.bf16.msra.mxu0 %v358
      %376 = vmatprep.subr.bf16.mxu0 0
      %377 = vmatpush2.bf16.msra.mxu0 0
      %378 = vmatprep.subr.bf16.mxu0 0
      %379 = vmatpush2.bf16.msra.mxu0 0
      %380 = vmatprep.subr.bf16.mxu0 0
      %381 = vmatpush2.bf16.msra.mxu0 0
      %382 = vmatprep.subr.bf16.mxu0 0
      %383 = vmatpush2.bf16.msra.mxu0 0
      %384 = vmatprep.subr.bf16.mxu0 0
      %385 = vmatpush2.bf16.msra.mxu0 0
      %386 = vmatprep.subr.bf16.mxu0 0
      %387 = vmatpush2.bf16.msra.mxu0 0
      %388 = vmatprep.subr.bf16.mxu0 0
      %389 = vmatpush2.bf16.msra.mxu0 0
      %390 = vmatprep.subr.bf16.mxu0 0
      %391 = vmatpush2.bf16.msra.mxu0 0
      %392 = vmatprep.mubr.bf16.mxu0 0
      %393 = vmatmul.mubr.bf16.gmra.mxu0 %v354
      %v394 = vpop.f32.mrf.mxu0
      %v395 = vadd.f32 0.0, %v394
      %v396 = vpop.f32.mrf.mxu0
      %v397 = vpop.f32.mrf.mxu0
      %v398 = vpop.f32.mrf.mxu0
      %399 = vdwg.mxu0
      %v400 = vadd.f32 %v351, %v395
      %401 = vst.msk [vmem:[#allocation4] sm:$0xff] %vm273, %v400
      %402 = vst.msk [vmem:[#allocation2] sm:$0xff] %vm343, %v325
      // Predicated region
      $region37: #{transformer_forward.12} parent=31 // pred_check
        %p403 = pneg %p261
      $region38: #{transformer_forward.12} parent=31 // pred_check_branch
        %405 = sbr.rel (%p403) target = $region40
      $region39: #{transformer_forward.12} parent=31 // pred_region
        %v406 = vld [vmem:[#allocation4] sm:$0xff]
        %v407 = vld [vmem:[#allocation3] sm:$0xff]
        %v408 = vrcp.pop %v407
        %410 = vset.pattern.permute.xlu0 0
        %411 = vperm.xlu0 %410, %v408
        %v412 = vpop.permute.xlu0 %411
        %v414 = vmul.f32 %v406, %v412
        %v415 = vpack.c.bf16 %v414, %v414
        %vm416 = vcmask 27648
        %417 = vst.msk [vmem:[%s259] sm:$0xf] %vm416, %v415
      $region40: #{transformer_forward.12} parent=31 // pred_fallthru
        _
      %p418 = scmp.lt.s32.totalorder %s19, 15
      %s419 = scalar_select %p418, %s19, 15
      %p420 = scmp.lt.s32.totalorder %s20, 0
      %s421 = scalar_select %p420, %s20, 0
      %s422 = sadd.s32 %s421, %s419
      %s423 = smul.addr %s422, 4
      %s424 = scalar_lea.vmem %s3, %s423
      // Predicated region
      $region41: #{transformer_forward.12} parent=31 // pred_check
        %p425 = pneg %p137
      $region42: #{transformer_forward.12} parent=31 // pred_check_branch
        %427 = sbr.rel (%p425) target = $region44
      $region43: #{transformer_forward.12} parent=31 // pred_region
        _
      $region44: #{transformer_forward.12} parent=31 // pred_fallthru
        _
    $region32: #{transformer_forward.12} parent=5 // pred_fallthru
      _
    %p428 = scmp.le.s32.totalorder 2, %s9
    // Predicated region
    $region45: #{transformer_forward.12} parent=5 // pred_check
      %p429 = pneg %p428
    $region46: #{transformer_forward.12} parent=5 // pred_check_branch
      %431 = sbr.rel (%p429) target = $region48
    $region47: #{transformer_forward.12} parent=5 // pred_region
      %s432 = ssub.s32 %s9, 2
      // Predicated region
      $region49: #{transformer_forward.12} parent=47 // pred_check
        %p433 = pneg %p143
      $region50: #{transformer_forward.12} parent=47 // pred_check_branch
        %435 = sbr.rel (%p433) target = $region52
      $region51: #{transformer_forward.12} parent=47 // pred_region
        %p436 = scmp.lt.s32.totalorder %s22, 15
        %s437 = scalar_select %p436, %s22, 15
        %p438 = scmp.lt.s32.totalorder %s23, 0
        %s439 = scalar_select %p438, %s23, 0
        %s440 = sadd.s32 %s439, %s437
        %s441 = smul.addr %s440, 4
        %s442 = scalar_lea.vmem %s3, %s441
      $region52: #{transformer_forward.12} parent=47 // pred_fallthru
        _
    $region48: #{transformer_forward.12} parent=5 // pred_fallthru
      _
  $region6: #{transformer_forward.12} parent=0 // loop_footer
    %s13 = sadd.s32 1, %s9
  $region7: #{transformer_forward.12} parent=0 // loop_footer_branch
    %8 = sbr.rel target = $region3
  $region8: #{transformer_forward.12} parent=0 // loop_exit
    _

// kernel: transformer_forward.13
$region0: #{transformer_forward.13}
  #allocation0 [shape = 'u32[]', space=smem, size = 0x4, offset = 0x4, fixed_abs, tag = 'smem constant byte address 0x4 - core index']
  #allocation1 [shape = 'u32[144,128]{1,0:T(1,128)}', space=vmem, size = 0x12000, scoped, tag = 'internal scratch']
  #allocation2 [shape = 'f32[16,32]{1,0:T(8,128)}', space=vmem, size = 0x2000, scoped, tag = 'scratch operand']
  %s0 = inlined_call_operand.vmem [shape: bf16[16,32], index: 0, kind: input, shape index: {}]
  %s1 = inlined_call_operand.vmem [shape: bf16[32,32], index: 1, kind: input, shape index: {}]
  %s2 = inlined_call_operand.vmem [shape: f32[1,32], index: 2, kind: input, shape index: {}]
  %s3 = inlined_call_operand.vmem [shape: bf16[16,32], index: 3, kind: input, shape index: {}]
  %s4 = inlined_call_operand.vmem [shape: f32[1,32], index: 4, kind: input, shape index: {}]
  %s5 = inlined_call_operand.vmem [shape: f32[1,32], index: 5, kind: input, shape index: {}]
  %s6 = inlined_call_operand.vmem [shape: bf16[16,32], index: 6, kind: output, shape index: {}]
  %s7 = sld [smem:[#allocation0]]
  $region42: #{transformer_forward.13} parent=0
    _
  %s9 = ssub.s32 1, %s7
  %s10 = scalar_select 0, %s9, %s7
  // Predicated region
  $region2: #{transformer_forward.13} parent=0 // pred_check
    _
  $region3: #{transformer_forward.13} parent=0 // pred_check_branch
    %12 = sbr.rel (0) target = $region5
  $region4: #{transformer_forward.13} parent=0 // pred_region
    _
  $region5: #{transformer_forward.13} parent=0 // pred_fallthru
    _
  // Predicated region
  $region6: #{transformer_forward.13} parent=0 // pred_check
    _
  $region7: #{transformer_forward.13} parent=0 // pred_check_branch
    %14 = sbr.rel (0) target = $region9
  $region8: #{transformer_forward.13} parent=0 // pred_region
    _
  $region9: #{transformer_forward.13} parent=0 // pred_fallthru
    _
  // Predicated region
  $region10: #{transformer_forward.13} parent=0 // pred_check
    _
  $region11: #{transformer_forward.13} parent=0 // pred_check_branch
    %16 = sbr.rel (0) target = $region13
  $region12: #{transformer_forward.13} parent=0 // pred_region
    _
  $region13: #{transformer_forward.13} parent=0 // pred_fallthru
    _
  // Predicated region
  $region14: #{transformer_forward.13} parent=0 // pred_check
    _
  $region15: #{transformer_forward.13} parent=0 // pred_check_branch
    %18 = sbr.rel (0) target = $region17
  $region16: #{transformer_forward.13} parent=0 // pred_region
    _
  $region17: #{transformer_forward.13} parent=0 // pred_fallthru
    _
  // Predicated region
  $region18: #{transformer_forward.13} parent=0 // pred_check
    _
  $region19: #{transformer_forward.13} parent=0 // pred_check_branch
    %20 = sbr.rel (0) target = $region21
  $region20: #{transformer_forward.13} parent=0 // pred_region
    _
  $region21: #{transformer_forward.13} parent=0 // pred_fallthru
    _
  // Predicated region
  $region22: #{transformer_forward.13} parent=0 // pred_check
    _
  $region23: #{transformer_forward.13} parent=0 // pred_check_branch
    %22 = sbr.rel (0) target = $region25
  $region24: #{transformer_forward.13} parent=0 // pred_region
    _
  $region25: #{transformer_forward.13} parent=0 // pred_fallthru
    _
  %p24 = scmp.eq.s32.totalorder 0, 0
  // Predicated region
  $region26: #{transformer_forward.13} parent=0 // pred_check
    %p25 = pneg %p24
  $region27: #{transformer_forward.13} parent=0 // pred_check_branch
    %27 = sbr.rel (%p25) target = $region29
  $region28: #{transformer_forward.13} parent=0 // pred_region
    %vm28 = vcmask 261120
    %29 = vst.msk [vmem:[#allocation2] sm:$0xff] %vm28, 0.0
    %30 = vst.msk [vmem:[#allocation2 + $0x8] sm:$0xff] %vm28, 0.0
  $region29: #{transformer_forward.13} parent=0 // pred_fallthru
    _
  %v31 = vld [vmem:[#allocation2] sm:$0xff]
  %v32 = vld [vmem:[#allocation2 + $0x8] sm:$0xff]
  %v33 = vld [vmem:[%s0] sm:$0xf]
  %v34 = vld [vmem:[%s0 + $0x4] sm:$0xf]
  %v35 = vld [vmem:[%s1] sm:$0xf]
  %v36 = vld [vmem:[%s1 + $0x4] sm:$0xf]
  %v37 = vld [vmem:[%s1 + $0x8] sm:$0xf]
  %v38 = vld [vmem:[%s1 + $0xc] sm:$0xf]
  %v41 = vunpack.c.l.b16 %v33
  %v42 = vunpack.c.l.b16 %v34
  %v43 = vpack.c.b16 %v42, %v41
  %v48 = vunpack.c.l.b16 %v35
  %v49 = vunpack.c.l.b16 %v36
  %v50 = vunpack.c.l.b16 %v37
  %v51 = vunpack.c.l.b16 %v38
  %v52 = vpack.c.b16 %v49, %v48
  %v53 = vpack.c.b16 %v51, %v50
  %vm56 = vcmask 261120
  %v58 = vsel %vm56, %v43, 0
  %60 = vmatprep.subr.bf16.mxu0 0
  %61 = vmatpush1.bf16.msra.mxu0 0
  %62 = vmatprep.subr.bf16.mxu0 0
  %63 = vmatpush1.bf16.msra.mxu0 0
  %64 = vmatprep.subr.bf16.mxu0 0
  %65 = vmatpush1.bf16.msra.mxu0 0
  %66 = vmatprep.subr.bf16.mxu0 0
  %67 = vmatpush1.bf16.msra.mxu0 0
  %68 = vmatprep.subr.bf16.mxu0 0
  %69 = vmatpush1.bf16.msra.mxu0 0
  %70 = vmatprep.subr.bf16.mxu0 0
  %71 = vmatpush1.bf16.msra.mxu0 0
  %72 = vmatprep.subr.bf16.mxu0 0
  %73 = vmatpush1.bf16.msra.mxu0 %v53
  %74 = vmatprep.subr.bf16.mxu0 0
  %75 = vmatpush1.bf16.msra.mxu0 %v52
  %76 = vmatprep.subr.bf16.mxu0 0
  %77 = vmatpush2.bf16.msra.mxu0 0
  %78 = vmatprep.subr.bf16.mxu0 0
  %79 = vmatpush2.bf16.msra.mxu0 0
  %80 = vmatprep.subr.bf16.mxu0 0
  %81 = vmatpush2.bf16.msra.mxu0 0
  %82 = vmatprep.subr.bf16.mxu0 0
  %83 = vmatpush2.bf16.msra.mxu0 0
  %84 = vmatprep.subr.bf16.mxu0 0
  %85 = vmatpush2.bf16.msra.mxu0 0
  %86 = vmatprep.subr.bf16.mxu0 0
  %87 = vmatpush2.bf16.msra.mxu0 0
  %88 = vmatprep.subr.bf16.mxu0 0
  %89 = vmatpush2.bf16.msra.mxu0 0
  %90 = vmatprep.subr.bf16.mxu0 0
  %91 = vmatpush2.bf16.msra.mxu0 0
  %92 = vmatprep.mubr.bf16.mxu0 0
  %93 = vmatmul.mubr.bf16.gmra.mxu0 %v58
  %v94 = vpop.f32.mrf.mxu0
  %v95 = vadd.f32 0.0, %v94
  %v96 = vpop.f32.mrf.mxu0
  %v97 = vpop.f32.mrf.mxu0
  %v98 = vadd.f32 0.0, %v97
  %v99 = vpop.f32.mrf.mxu0
  %100 = vdwg.mxu0
  %v101 = vadd.f32 %v31, %v95
  %v102 = vadd.f32 %v32, %v98
  %103 = vst.msk [vmem:[#allocation2] sm:$0xff] %vm56, %v101
  %104 = vst.msk [vmem:[#allocation2 + $0x8] sm:$0xff] %vm56, %v102
  // Predicated region
  $region30: #{transformer_forward.13} parent=0 // pred_check
    %p105 = pneg %p24
  $region31: #{transformer_forward.13} parent=0 // pred_check_branch
    %107 = sbr.rel (%p105) target = $region33
  $region32: #{transformer_forward.13} parent=0 // pred_region
    %v108 = vld [vmem:[#allocation2] sm:$0xff]
    %v109 = vld [vmem:[#allocation2 + $0x8] sm:$0xff]
    %v110 = vld [vmem:[%s2] sm:$0x1]
    %v112 = vlaneseq
    %v113 = vshrl.u32 %v112, 7
    %v114 = vsub.s32 0, %v113
    %v115 = vrot.slane %v110, %v114
    %v117 = vadd.f32 %v108, %v115
    %v118 = vadd.f32 %v109, %v115
    %v119 = vld [vmem:[%s3] sm:$0xf]
    %v120 = vld [vmem:[%s3 + $0x4] sm:$0xf]
    %v121 = vunpack.c.l.bf16 %v119
    %v122 = vunpack.c.l.bf16 %v120
    %v123 = vadd.f32 %v117, %v121
    %v124 = vadd.f32 %v118, %v122
    %v125 = vsel %vm56, %v123, 0.0
    %126 = vadd.xlane.f32.xlu0 %v125
    %v127 = vpop.xlane.xlu0 %126
    %v128 = vsel %vm56, %v124, 0.0
    %129 = vadd.xlane.f32.xlu0 %v128
    %v130 = vpop.xlane.xlu0 %129
    %v131 = vrcp.pop 32.0
    %v132 = vmul.f32 %v127, %v131
    %v133 = vmul.f32 %v130, %v131
    %v134 = vsub.f32 %v123, %v132
    %v135 = vsub.f32 %v124, %v133
    %v136 = vmul.f32 %v134, %v134
    %v137 = vmul.f32 %v135, %v135
    %v138 = vsel %vm56, %v136, 0.0
    %139 = vadd.xlane.f32.xlu0 %v138
    %v140 = vpop.xlane.xlu0 %139
    %v141 = vsel %vm56, %v137, 0.0
    %142 = vadd.xlane.f32.xlu0 %v141
    %v143 = vpop.xlane.xlu0 %142
    %v144 = vmul.f32 %v140, %v131
    %v145 = vmul.f32 %v143, %v131
    %v146 = vadd.f32 %v144, 1e-05
    %v147 = vadd.f32 %v145, 1e-05
    %v148 = vrsqrt.pop %v146
    %v149 = vrsqrt.pop %v147
    %v150 = vmul.f32 %v134, %v148
    %v151 = vmul.f32 %v135, %v149
    %v152 = vld [vmem:[%s4] sm:$0x1]
    %v154 = vlaneseq
    %v155 = vshrl.u32 %v154, 7
    %v156 = vsub.s32 0, %v155
    %v157 = vrot.slane %v152, %v156
    %v159 = vmul.f32 %v150, %v157
    %v160 = vmul.f32 %v151, %v157
    %v161 = vld [vmem:[%s5] sm:$0x1]
    %v163 = vlaneseq
    %v164 = vshrl.u32 %v163, 7
    %v165 = vsub.s32 0, %v164
    %v166 = vrot.slane %v161, %v165
    %v168 = vadd.f32 %v159, %v166
    %v169 = vadd.f32 %v160, %v166
    %v170 = vpack.c.bf16 %v169, %v168
    %v172 = vunpack.c.l.b16 %v170
    %v173 = vunpack.c.h.b16 %v170
    %v174 = vpack.c.b16 %v172, %v172
    %v175 = vpack.c.b16 %v173, %v173
    %vm178 = vcmask 257024
    %179 = vst.msk [vmem:[%s6] sm:$0xf] %vm178, %v174
    %180 = vst.msk [vmem:[%s6 + $0x4] sm:$0xf] %vm178, %v175
  $region33: #{transformer_forward.13} parent=0 // pred_fallthru
    _
  // Predicated region
  $region34: #{transformer_forward.13} parent=0 // pred_check
    _
  $region35: #{transformer_forward.13} parent=0 // pred_check_branch
    %182 = sbr.rel (0) target = $region37
  $region36: #{transformer_forward.13} parent=0 // pred_region
    _
  $region37: #{transformer_forward.13} parent=0 // pred_fallthru
    _
  // Predicated region
  $region38: #{transformer_forward.13} parent=0 // pred_check
    _
  $region39: #{transformer_forward.13} parent=0 // pred_check_branch
    %184 = sbr.rel (0) target = $region41
  $region40: #{transformer_forward.13} parent=0 // pred_region
    _
  $region41: #{transformer_forward.13} parent=0 // pred_fallthru
    _

// kernel: transformer_forward.19
$region0: #{transformer_forward.19}
  #allocation0 [shape = 'u32[]', space=smem, size = 0x4, offset = 0x4, fixed_abs, tag = 'smem constant byte address 0x4 - core index']
  #allocation1 [shape = 'u32[144,128]{1,0:T(1,128)}', space=vmem, size = 0x12000, scoped, tag = 'internal scratch']
  #allocation2 [shape = 'f32[8,128]{1,0:T(8,128)}', space=vmem, size = 0x1000, scoped, tag = 'scratch operand']
  %s0 = inlined_call_operand.vmem [shape: bf16[8,32], index: 0, kind: input, shape index: {}]
  %s1 = inlined_call_operand.vmem [shape: bf16[32,128], index: 1, kind: input, shape index: {}]
  %s2 = inlined_call_operand.vmem [shape: f32[1,128], index: 2, kind: input, shape index: {}]
  %s3 = inlined_call_operand.hbm [shape: f32[8,128], index: 3, kind: output, shape index: {}]
  %s4 = sld [smem:[#allocation0]]
  $region30: #{transformer_forward.19} parent=0
    _
  %s6 = ssub.s32 1, %s4
  %s7 = scalar_select 0, %s6, %s4
  $region1: #{transformer_forward.19} parent=0
    #allocation3 [shape = 'u8[4096]{0}', space=vmem, size = 0x1000, scoped, tag = 'output window, operand 0, single buffered']
    #allocation4 [shape = 's32[1]{0}', space=sflag, size = 0x4, scoped, tag = 'scoped memory for transformer_forward.19']
    %8 = vsyncpa [#allocation4], 0
    // Predicated region
    $region2: #{transformer_forward.19} parent=1 // pred_check
      _
    $region3: #{transformer_forward.19} parent=1 // pred_check_branch
      %10 = sbr.rel (0) target = $region5
    $region4: #{transformer_forward.19} parent=1 // pred_region
      _
    $region5: #{transformer_forward.19} parent=1 // pred_fallthru
      _
    // Predicated region
    $region6: #{transformer_forward.19} parent=1 // pred_check
      _
    $region7: #{transformer_forward.19} parent=1 // pred_check_branch
      %12 = sbr.rel (0) target = $region9
    $region8: #{transformer_forward.19} parent=1 // pred_region
      _
    $region9: #{transformer_forward.19} parent=1 // pred_fallthru
      _
    // Predicated region
    $region10: #{transformer_forward.19} parent=1 // pred_check
      _
    $region11: #{transformer_forward.19} parent=1 // pred_check_branch
      %14 = sbr.rel (0) target = $region13
    $region12: #{transformer_forward.19} parent=1 // pred_region
      _
    $region13: #{transformer_forward.19} parent=1 // pred_fallthru
      _
    %p16 = scmp.eq.s32.totalorder 0, 0
    // Predicated region
    $region14: #{transformer_forward.19} parent=1 // pred_check
      %p17 = pneg %p16
    $region15: #{transformer_forward.19} parent=1 // pred_check_branch
      %19 = sbr.rel (%p17) target = $region17
    $region16: #{transformer_forward.19} parent=1 // pred_region
      %20 = vst [vmem:[#allocation2] sm:$0xff] 0.0
    $region17: #{transformer_forward.19} parent=1 // pred_fallthru
      _
    %v21 = vld [vmem:[#allocation2] sm:$0xff]
    %v22 = vld [vmem:[%s0] sm:$0xf]
    %v23 = vld [vmem:[%s1] sm:$0xf]
    %v24 = vld [vmem:[%s1 + $0x4] sm:$0xf]
    %v25 = vld [vmem:[%s1 + $0x8] sm:$0xf]
    %v26 = vld [vmem:[%s1 + $0xc] sm:$0xf]
    %v31 = vunpack.c.l.b16 %v23
    %v32 = vunpack.c.l.b16 %v24
    %v33 = vunpack.c.l.b16 %v25
    %v34 = vunpack.c.l.b16 %v26
    %v35 = vpack.c.b16 %v32, %v31
    %v36 = vpack.c.b16 %v34, %v33
    %vm39 = vcmask 261120
    %v41 = vsel %vm39, %v22, 0
    %43 = vmatprep.subr.bf16.mxu0 0
    %44 = vmatpush1.bf16.msra.mxu0 0
    %45 = vmatprep.subr.bf16.mxu0 0
    %46 = vmatpush1.bf16.msra.mxu0 0
    %47 = vmatprep.subr.bf16.mxu0 0
    %48 = vmatpush1.bf16.msra.mxu0 0
    %49 = vmatprep.subr.bf16.mxu0 0
    %50 = vmatpush1.bf16.msra.mxu0 0
    %51 = vmatprep.subr.bf16.mxu0 0
    %52 = vmatpush1.bf16.msra.mxu0 0
    %53 = vmatprep.subr.bf16.mxu0 0
    %54 = vmatpush1.bf16.msra.mxu0 0
    %55 = vmatprep.subr.bf16.mxu0 0
    %56 = vmatpush1.bf16.msra.mxu0 %v36
    %57 = vmatprep.subr.bf16.mxu0 0
    %58 = vmatpush1.bf16.msra.mxu0 %v35
    %59 = vmatprep.subr.bf16.mxu0 0
    %60 = vmatpush2.bf16.msra.mxu0 0
    %61 = vmatprep.subr.bf16.mxu0 0
    %62 = vmatpush2.bf16.msra.mxu0 0
    %63 = vmatprep.subr.bf16.mxu0 0
    %64 = vmatpush2.bf16.msra.mxu0 0
    %65 = vmatprep.subr.bf16.mxu0 0
    %66 = vmatpush2.bf16.msra.mxu0 0
    %67 = vmatprep.subr.bf16.mxu0 0
    %68 = vmatpush2.bf16.msra.mxu0 0
    %69 = vmatprep.subr.bf16.mxu0 0
    %70 = vmatpush2.bf16.msra.mxu0 0
    %71 = vmatprep.subr.bf16.mxu0 0
    %72 = vmatpush2.bf16.msra.mxu0 0
    %73 = vmatprep.subr.bf16.mxu0 0
    %74 = vmatpush2.bf16.msra.mxu0 0
    %75 = vmatprep.mubr.bf16.mxu0 0
    %76 = vmatmul.mubr.bf16.gmra.mxu0 %v41
    %v77 = vpop.f32.mrf.mxu0
    %v78 = vadd.f32 0.0, %v77
    %v79 = vpop.f32.mrf.mxu0
    %v80 = vpop.f32.mrf.mxu0
    %v81 = vpop.f32.mrf.mxu0
    %82 = vdwg.mxu0
    %v83 = vadd.f32 %v21, %v78
    %84 = vst [vmem:[#allocation2] sm:$0xff] %v83
    // Predicated region
    $region18: #{transformer_forward.19} parent=1 // pred_check
      %p85 = pneg %p16
    $region19: #{transformer_forward.19} parent=1 // pred_check_branch
      %87 = sbr.rel (%p85) target = $region21
    $region20: #{transformer_forward.19} parent=1 // pred_region
      %v88 = vld [vmem:[#allocation2] sm:$0xff]
      %v89 = vld [vmem:[%s2] sm:$0x1]
      %v91 = vlaneseq
      %v92 = vshrl.u32 %v91, 7
      %v93 = vsub.s32 0, %v92
      %v94 = vrot.slane %v89, %v93
      %v96 = vadd.f32 %v88, %v94
      %97 = vst [vmem:[#allocation3] sm:$0xff] %v96
    $region21: #{transformer_forward.19} parent=1 // pred_fallthru
      _
    // Predicated region
    $region22: #{transformer_forward.19} parent=1 // pred_check
      _
    $region23: #{transformer_forward.19} parent=1 // pred_check_branch
      %99 = sbr.rel (0) target = $region25
    $region24: #{transformer_forward.19} parent=1 // pred_region
      %s101 = ssub.s32 128, 128
      %102 = vsyncadd [#allocation4], %s101
      %s104 = sshll.u32 [#allocation3], 4
      %s105 = int_to_ptr.vmem [resolvable:$true] %s104
      %107 = dma.vmem_to_hbm [thread:$0]  %s105, 128, %s3, [#allocation4]
    $region25: #{transformer_forward.19} parent=1 // pred_fallthru
      _
    // Predicated region
    $region26: #{transformer_forward.19} parent=1 // pred_check
      _
    $region27: #{transformer_forward.19} parent=1 // pred_check_branch
      %109 = sbr.rel (0) target = $region29
    $region28: #{transformer_forward.19} parent=1 // pred_region
      %110 = dma.done [#allocation4], 128
    $region29: #{transformer_forward.19} parent=1 // pred_fallthru
      _
    %111 = vsyncpa [#allocation4], 1

// kernel: transformer_forward.14
$region0: #{transformer_forward.14}
  #allocation0 [shape = 'u32[]', space=smem, size = 0x4, offset = 0x4, fixed_abs, tag = 'smem constant byte address 0x4 - core index']
  #allocation1 [shape = 'u32[144,128]{1,0:T(1,128)}', space=vmem, size = 0x12000, scoped, tag = 'internal scratch']
  #allocation2 [shape = 'f32[16,32]{1,0:T(8,128)}', space=vmem, size = 0x2000, scoped, tag = 'scratch operand']
  %s0 = inlined_call_operand.vmem [shape: bf16[16,32], index: 0, kind: input, shape index: {}]
  %s1 = inlined_call_operand.vmem [shape: bf16[32,2048], index: 1, kind: input, shape index: {}]
  %s2 = inlined_call_operand.vmem [shape: f32[1,2048], index: 2, kind: input, shape index: {}]
  %s3 = inlined_call_operand.vmem [shape: bf16[2048,32], index: 3, kind: input, shape index: {}]
  %s4 = inlined_call_operand.vmem [shape: f32[1,32], index: 4, kind: input, shape index: {}]
  %s5 = inlined_call_operand.vmem [shape: f32[1,32], index: 5, kind: input, shape index: {}]
  %s6 = inlined_call_operand.vmem [shape: f32[1,32], index: 6, kind: input, shape index: {}]
  %s7 = inlined_call_operand.vmem [shape: bf16[16,32], index: 7, kind: output, shape index: {}]
  %s8 = sld [smem:[#allocation0]]
  $region92: #{transformer_forward.14} parent=0
    _
  %s10 = ssub.s32 1, %s8
  %s11 = scalar_select 0, %s10, %s8
  $region1: #{transformer_forward.14} parent=0
    #allocation3 [shape = 'u8[65536]{0}', space=vmem, size = 0x10000, scoped, tag = 'input window, operand 1']
    loop: start=0, step=1, limit=6
    $region2: #{transformer_forward.14} parent=1 // loop_pre_header
      _
    $region3: #{transformer_forward.14} parent=1 // loop_header
      %s13 = sphi 0, %s17
      %p14 = scmp.ge.s32.totalorder %s13, 6
      %s20 = sphi 0, %s32
      %s21 = sphi 0, %s28
      %s22 = sphi 0, %s20
      %s23 = sphi 0, %s21
      %s24 = sphi 0, %s22
      %s25 = sphi 0, %s23
      %s35 = sphi 0, %s37
      %s38 = sphi 0, %s35
      %s39 = sphi 0, %s38
      %s55 = sphi 0, %s39
      %s61 = sphi 0, %s63
      %s64 = sphi 0, %s61
      %s65 = sphi 0, %s64
      %s81 = sphi 0, %s65
      %s87 = sphi 0, %s89
      %s90 = sphi 0, %s87
      %s91 = sphi 0, %s90
      %s107 = sphi 0, %s91
      %s113 = sphi 0, %s115
      %s116 = sphi 0, %s113
      %s117 = sphi 0, %s116
      %s133 = sphi 0, %s117
      %s137 = sphi 0, %s137
      %s139 = sphi 0, %s137
      %s140 = sphi 0, %s139
      %s154 = sphi 0, %s140
      %s158 = sphi 0, %s158
      %s160 = sphi 0, %s158
      %s161 = sphi 0, %s160
      %s175 = sphi 0, %s161
      %s179 = sphi 0, %s179
      %s181 = sphi 0, %s179
      %s182 = sphi 0, %s181
      %s196 = sphi 0, %s182
      %s202 = sphi 0, %s204
      %s205 = sphi 0, %s202
      %s206 = sphi 0, %s205
      %s222 = sphi 0, %s206
    $region4: #{transformer_forward.14} parent=1 // loop_header_branch
      %16 = sbr.rel (%p14) target = $region8
    $region5: #{transformer_forward.14} parent=1 // loop_body
      %s18 = ssub.s32 %s13, 1
      %s19 = ssub.s32 %s13, 2
      %s26 = sadd.s32 1, %s21
      %p27 = scmp.ge.s32.totalorder %s26, 4
      %s28 = scalar_select %p27, 0, %s26
      %s29 = sadd.s32 1, %s20
      %s30 = scalar_select %p27, %s29, %s20
      %p31 = scmp.ge.s32.totalorder %s30, 1
      %s32 = scalar_select %p31, 0, %s30
      %s33 = ssub.s32 %s20, %s32
      %p34 = scmp.eq.s32.totalorder %s33, 0
      %s36 = sadd.s32 %s35, 1
      %s37 = scalar_select %p34, %s35, %s36
      %p40 = pneg %p34
      %p41 = scmp.eq.s32.totalorder %s13, 3
      %p42 = por %p40, %p41
      %p43 = scmp.ne.s32.totalorder %s35, %s38
      %p44 = scmp.eq.s32.totalorder %s13, 0
      %p45 = por %p43, %p44
      %p46 = scmp.ne.s32.totalorder %s35, %s38
      %p47 = scmp.eq.s32.totalorder %s18, 3
      %p48 = por %p46, %p47
      %p49 = scmp.ne.s32.totalorder %s38, %s39
      %p50 = scmp.eq.s32.totalorder %s18, 0
      %p51 = por %p49, %p50
      %p52 = scmp.ne.s32.totalorder %s38, %s39
      %p53 = scmp.eq.s32.totalorder %s19, 3
      %p54 = por %p52, %p53
      %p56 = scmp.ne.s32.totalorder %s39, %s55
      %p57 = scmp.eq.s32.totalorder %s19, 0
      %p58 = por %p56, %p57
      %s59 = ssub.s32 %s21, %s28
      %p60 = scmp.eq.s32.totalorder %s59, 0
      %s62 = sadd.s32 %s61, 1
      %s63 = scalar_select %p60, %s61, %s62
      %p66 = pneg %p60
      %p67 = scmp.eq.s32.totalorder %s13, 3
      %p68 = por %p66, %p67
      %p69 = scmp.ne.s32.totalorder %s61, %s64
      %p70 = scmp.eq.s32.totalorder %s13, 0
      %p71 = por %p69, %p70
      %p72 = scmp.ne.s32.totalorder %s61, %s64
      %p73 = scmp.eq.s32.totalorder %s18, 3
      %p74 = por %p72, %p73
      %p75 = scmp.ne.s32.totalorder %s64, %s65
      %p76 = scmp.eq.s32.totalorder %s18, 0
      %p77 = por %p75, %p76
      %p78 = scmp.ne.s32.totalorder %s64, %s65
      %p79 = scmp.eq.s32.totalorder %s19, 3
      %p80 = por %p78, %p79
      %p82 = scmp.ne.s32.totalorder %s65, %s81
      %p83 = scmp.eq.s32.totalorder %s19, 0
      %p84 = por %p82, %p83
      %s85 = ssub.s32 %s21, %s28
      %p86 = scmp.eq.s32.totalorder %s85, 0
      %s88 = sadd.s32 %s87, 1
      %s89 = scalar_select %p86, %s87, %s88
      %p92 = pneg %p86
      %p93 = scmp.eq.s32.totalorder %s13, 3
      %p94 = por %p92, %p93
      %p95 = scmp.ne.s32.totalorder %s87, %s90
      %p96 = scmp.eq.s32.totalorder %s13, 0
      %p97 = por %p95, %p96
      %p98 = scmp.ne.s32.totalorder %s87, %s90
      %p99 = scmp.eq.s32.totalorder %s18, 3
      %p100 = por %p98, %p99
      %p101 = scmp.ne.s32.totalorder %s90, %s91
      %p102 = scmp.eq.s32.totalorder %s18, 0
      %p103 = por %p101, %p102
      %p104 = scmp.ne.s32.totalorder %s90, %s91
      %p105 = scmp.eq.s32.totalorder %s19, 3
      %p106 = por %p104, %p105
      %p108 = scmp.ne.s32.totalorder %s91, %s107
      %p109 = scmp.eq.s32.totalorder %s19, 0
      %p110 = por %p108, %p109
      %s111 = ssub.s32 %s21, %s28
      %p112 = scmp.eq.s32.totalorder %s111, 0
      %s114 = sadd.s32 %s113, 1
      %s115 = scalar_select %p112, %s113, %s114
      %p118 = pneg %p112
      %p119 = scmp.eq.s32.totalorder %s13, 3
      %p120 = por %p118, %p119
      %p121 = scmp.ne.s32.totalorder %s113, %s116
      %p122 = scmp.eq.s32.totalorder %s13, 0
      %p123 = por %p121, %p122
      %p124 = scmp.ne.s32.totalorder %s113, %s116
      %p125 = scmp.eq.s32.totalorder %s18, 3
      %p126 = por %p124, %p125
      %p127 = scmp.ne.s32.totalorder %s116, %s117
      %p128 = scmp.eq.s32.totalorder %s18, 0
      %p129 = por %p127, %p128
      %p130 = scmp.ne.s32.totalorder %s116, %s117
      %p131 = scmp.eq.s32.totalorder %s19, 3
      %p132 = por %p130, %p131
      %p134 = scmp.ne.s32.totalorder %s117, %s133
      %p135 = scmp.eq.s32.totalorder %s19, 0
      %p136 = por %p134, %p135
      %s138 = sadd.s32 %s137, 1
      %p141 = scmp.eq.s32.totalorder %s13, 3
      %p142 = scmp.ne.s32.totalorder %s137, %s139
      %p143 = scmp.eq.s32.totalorder %s13, 0
      %p144 = por %p142, %p143
      %p145 = scmp.ne.s32.totalorder %s137, %s139
      %p146 = scmp.eq.s32.totalorder %s18, 3
      %p147 = por %p145, %p146
      %p148 = scmp.ne.s32.totalorder %s139, %s140
      %p149 = scmp.eq.s32.totalorder %s18, 0
      %p150 = por %p148, %p149
      %p151 = scmp.ne.s32.totalorder %s139, %s140
      %p152 = scmp.eq.s32.totalorder %s19, 3
      %p153 = por %p151, %p152
      %p155 = scmp.ne.s32.totalorder %s140, %s154
      %p156 = scmp.eq.s32.totalorder %s19, 0
      %p157 = por %p155, %p156
      %s159 = sadd.s32 %s158, 1
      %p162 = scmp.eq.s32.totalorder %s13, 3
      %p163 = scmp.ne.s32.totalorder %s158, %s160
      %p164 = scmp.eq.s32.totalorder %s13, 0
      %p165 = por %p163, %p164
      %p166 = scmp.ne.s32.totalorder %s158, %s160
      %p167 = scmp.eq.s32.totalorder %s18, 3
      %p168 = por %p166, %p167
      %p169 = scmp.ne.s32.totalorder %s160, %s161
      %p170 = scmp.eq.s32.totalorder %s18, 0
      %p171 = por %p169, %p170
      %p172 = scmp.ne.s32.totalorder %s160, %s161
      %p173 = scmp.eq.s32.totalorder %s19, 3
      %p174 = por %p172, %p173
      %p176 = scmp.ne.s32.totalorder %s161, %s175
      %p177 = scmp.eq.s32.totalorder %s19, 0
      %p178 = por %p176, %p177
      %s180 = sadd.s32 %s179, 1
      %p183 = scmp.eq.s32.totalorder %s13, 3
      %p184 = scmp.ne.s32.totalorder %s179, %s181
      %p185 = scmp.eq.s32.totalorder %s13, 0
      %p186 = por %p184, %p185
      %p187 = scmp.ne.s32.totalorder %s179, %s181
      %p188 = scmp.eq.s32.totalorder %s18, 3
      %p189 = por %p187, %p188
      %p190 = scmp.ne.s32.totalorder %s181, %s182
      %p191 = scmp.eq.s32.totalorder %s18, 0
      %p192 = por %p190, %p191
      %p193 = scmp.ne.s32.totalorder %s181, %s182
      %p194 = scmp.eq.s32.totalorder %s19, 3
      %p195 = por %p193, %p194
      %p197 = scmp.ne.s32.totalorder %s182, %s196
      %p198 = scmp.eq.s32.totalorder %s19, 0
      %p199 = por %p197, %p198
      %s200 = ssub.s32 %s20, %s32
      %p201 = scmp.eq.s32.totalorder %s200, 0
      %s203 = sadd.s32 %s202, 1
      %s204 = scalar_select %p201, %s202, %s203
      %p207 = pneg %p201
      %p208 = scmp.eq.s32.totalorder %s13, 3
      %p209 = por %p207, %p208
      %p210 = scmp.ne.s32.totalorder %s202, %s205
      %p211 = scmp.eq.s32.totalorder %s13, 0
      %p212 = por %p210, %p211
      %p213 = scmp.ne.s32.totalorder %s202, %s205
      %p214 = scmp.eq.s32.totalorder %s18, 3
      %p215 = por %p213, %p214
      %p216 = scmp.ne.s32.totalorder %s205, %s206
      %p217 = scmp.eq.s32.totalorder %s18, 0
      %p218 = por %p216, %p217
      %p219 = scmp.ne.s32.totalorder %s205, %s206
      %p220 = scmp.eq.s32.totalorder %s19, 3
      %p221 = por %p219, %p220
      %p223 = scmp.ne.s32.totalorder %s206, %s222
      %p224 = scmp.eq.s32.totalorder %s19, 0
      %p225 = por %p223, %p224
      %p226 = scmp.le.s32.totalorder 1, %s13
      %p227 = scmp.lt.s32.totalorder %s13, 5
      %p228 = pnand %p226, %p227
      %p229 = pneg %p228
      // Predicated region
      $region9: #{transformer_forward.14} parent=5 // pred_check
        _
      $region10: #{transformer_forward.14} parent=5 // pred_check_branch
        %231 = sbr.rel (%p228) target = $region12
      $region11: #{transformer_forward.14} parent=5 // pred_region
        %s232 = ssub.s32 %s13, 1
        // Predicated region
        $region13: #{transformer_forward.14} parent=11 // pred_check
          %p233 = pneg %p51
        $region14: #{transformer_forward.14} parent=11 // pred_check_branch
          %235 = sbr.rel (%p233) target = $region16
        $region15: #{transformer_forward.14} parent=11 // pred_region
          %s236 = smul.u32 2, %s22
          %p237 = scmp.lt.s32.totalorder %s236, 1
          %s238 = scalar_select %p237, %s236, 1
          %s239 = smul.addr %s238, 4
          %s240 = scalar_lea.vmem %s0, %s239
          %s241 = smul.u32 2, %s22
        $region16: #{transformer_forward.14} parent=11 // pred_fallthru
          _
        // Predicated region
        $region17: #{transformer_forward.14} parent=11 // pred_check
          %p242 = pneg %p150
        $region18: #{transformer_forward.14} parent=11 // pred_check_branch
          %244 = sbr.rel (%p242) target = $region20
        $region19: #{transformer_forward.14} parent=11 // pred_region
          _
        $region20: #{transformer_forward.14} parent=11 // pred_fallthru
          _
        // Predicated region
        $region21: #{transformer_forward.14} parent=11 // pred_check
          %p245 = pneg %p171
        $region22: #{transformer_forward.14} parent=11 // pred_check_branch
          %247 = sbr.rel (%p245) target = $region24
        $region23: #{transformer_forward.14} parent=11 // pred_region
          _
        $region24: #{transformer_forward.14} parent=11 // pred_fallthru
          _
        // Predicated region
        $region25: #{transformer_forward.14} parent=11 // pred_check
          %p248 = pneg %p192
        $region26: #{transformer_forward.14} parent=11 // pred_check_branch
          %250 = sbr.rel (%p248) target = $region28
        $region27: #{transformer_forward.14} parent=11 // pred_region
          _
        $region28: #{transformer_forward.14} parent=11 // pred_fallthru
          _
      $region12: #{transformer_forward.14} parent=5 // pred_fallthru
        _
      %p251 = scmp.lt.s32.totalorder %s13, 4
      // Predicated region
      $region29: #{transformer_forward.14} parent=5 // pred_check
        %p252 = pneg %p251
      $region30: #{transformer_forward.14} parent=5 // pred_check_branch
        %254 = sbr.rel (%p252) target = $region32
      $region31: #{transformer_forward.14} parent=5 // pred_region
        // Predicated region
        $region33: #{transformer_forward.14} parent=31 // pred_check
          %p255 = pneg %p71
        $region34: #{transformer_forward.14} parent=31 // pred_check_branch
          %257 = sbr.rel (%p255) target = $region36
        $region35: #{transformer_forward.14} parent=31 // pred_region
          %s258 = sand.u32 %s61, 1
          %s259 = sand.u32 %s61, 1
          %s260 = smul.addr %s259, 64
          %s261 = scalar_lea.vmem [#allocation3], %s260
          %s262 = smul.u32 4, %s21
          %s263 = smul.addr %s262, 4
          %s264 = scalar_lea.vmem %s1, %s263
          // Predicated region
          $region37: #{transformer_forward.14} parent=35 // pred_check
            _
          $region38: #{transformer_forward.14} parent=35 // pred_check_branch
            %266 = sbr.rel (0) target = $region40
          $region39: #{transformer_forward.14} parent=35 // pred_region
            // Predicated region
            $region41: #{transformer_forward.14} parent=39 // pred_check
              _
            $region42: #{transformer_forward.14} parent=39 // pred_check_branch
              %268 = sbr.rel (0) target = $region44
            $region43: #{transformer_forward.14} parent=39 // pred_region
              loop: start=0, step=1, limit=1
              $region45: #{transformer_forward.14} parent=43 // loop_pre_header
                _
              $region46: #{transformer_forward.14} parent=43 // loop_header
                %s270 = sphi 0, %s274
                %p271 = scmp.ge.s32.totalorder %s270, 1
                %s275 = sphi %s264, %s264
                %s276 = sphi %s261, %s261
              $region47: #{transformer_forward.14} parent=43 // loop_header_branch
                %273 = sbr.rel (%p271) target = $region51
              $region48: #{transformer_forward.14} parent=43 // loop_body
                %v277 = vld [vmem:[%s275] sm:$0xff]
                %278 = vst [vmem:[%s276] sm:$0xff] %v277
                %v279 = vld [vmem:[%s275 + $0x8] sm:$0xff]
                %280 = vst [vmem:[%s276 + $0x8] sm:$0xff] %v279
                %v281 = vld [vmem:[%s275 + $0x40] sm:$0xff]
                %282 = vst [vmem:[%s276 + $0x10] sm:$0xff] %v281
                %v283 = vld [vmem:[%s275 + $0x48] sm:$0xff]
                %284 = vst [vmem:[%s276 + $0x18] sm:$0xff] %v283
                %v285 = vld [vmem:[%s275 + $0x80] sm:$0xff]
                %286 = vst [vmem:[%s276 + $0x20] sm:$0xff] %v285
                %v287 = vld [vmem:[%s275 + $0x88] sm:$0xff]
                %288 = vst [vmem:[%s276 + $0x28] sm:$0xff] %v287
                %v289 = vld [vmem:[%s275 + $0xc0] sm:$0xff]
                %290 = vst [vmem:[%s276 + $0x30] sm:$0xff] %v289
                %v291 = vld [vmem:[%s275 + $0xc8] sm:$0xff]
                %292 = vst [vmem:[%s276 + $0x38] sm:$0xff] %v291
              $region49: #{transformer_forward.14} parent=43 // loop_footer
                %s274 = sadd.s32 1, %s270
              $region50: #{transformer_forward.14} parent=43 // loop_footer_branch
                %269 = sbr.rel target = $region46
              $region51: #{transformer_forward.14} parent=43 // loop_exit
                _
            $region44: #{transformer_forward.14} parent=39 // pred_fallthru
              _
            // Predicated region
            $region52: #{transformer_forward.14} parent=39 // pred_check
              _
            $region53: #{transformer_forward.14} parent=39 // pred_check_branch
              %294 = sbr.rel target = $region55
            $region54: #{transformer_forward.14} parent=39 // pred_region
              _
            $region55: #{transformer_forward.14} parent=39 // pred_fallthru
              _
          $region40: #{transformer_forward.14} parent=35 // pred_fallthru
            _
          %295 = vnop
        $region36: #{transformer_forward.14} parent=31 // pred_fallthru
          _
        // Predicated region
        $region56: #{transformer_forward.14} parent=31 // pred_check
          %p296 = pneg %p97
        $region57: #{transformer_forward.14} parent=31 // pred_check_branch
          %298 = sbr.rel (%p296) target = $region59
        $region58: #{transformer_forward.14} parent=31 // pred_region
          %s299 = smul.u32 4, %s21
          %p300 = scmp.lt.s32.totalorder %s299, 15
          %s301 = scalar_select %p300, %s299, 15
          %s302 = scalar_lea.vmem %s2, %s301
          %s303 = smul.u32 4, %s21
        $region59: #{transformer_forward.14} parent=31 // pred_fallthru
          _
        // Predicated region
        $region60: #{transformer_forward.14} parent=31 // pred_check
          %p304 = pneg %p123
        $region61: #{transformer_forward.14} parent=31 // pred_check_branch
          %306 = sbr.rel (%p304) target = $region63
        $region62: #{transformer_forward.14} parent=31 // pred_region
          %s307 = smul.u32 64, %s21
          %p308 = scmp.lt.s32.totalorder %s307, 255
          %s309 = scalar_select %p308, %s307, 255
          %s310 = smul.addr %s309, 4
          %s311 = scalar_lea.vmem %s3, %s310
          %s312 = smul.u32 64, %s21
        $region63: #{transformer_forward.14} parent=31 // pred_fallthru
          _
      $region32: #{transformer_forward.14} parent=5 // pred_fallthru
        _
      %p313 = scmp.le.s32.totalorder 1, %s13
      %p314 = scmp.lt.s32.totalorder %s13, 5
      %p315 = pnand %p313, %p314
      %p316 = pneg %p315
      // Predicated region
      $region64: #{transformer_forward.14} parent=5 // pred_check
        _
      $region65: #{transformer_forward.14} parent=5 // pred_check_branch
        %318 = sbr.rel (%p315) target = $region67
      $region66: #{transformer_forward.14} parent=5 // pred_region
        %s319 = ssub.s32 %s13, 1
        %s320 = sand.u32 %s64, 1
        %s321 = sand.u32 %s64, 1
        %s322 = smul.addr %s321, 64
        %s323 = scalar_lea.vmem [#allocation3], %s322
        // Predicated region
        $region68: #{transformer_forward.14} parent=66 // pred_check
          %p324 = pneg %p77
        $region69: #{transformer_forward.14} parent=66 // pred_check_branch
          %326 = sbr.rel (%p324) target = $region71
        $region70: #{transformer_forward.14} parent=66 // pred_region
          _
        $region71: #{transformer_forward.14} parent=66 // pred_fallthru
          _
        %s327 = smul.u32 2, %s22
        %p328 = scmp.lt.s32.totalorder %s327, 1
        %s329 = scalar_select %p328, %s327, 1
        %s330 = smul.addr %s329, 4
        %s331 = scalar_lea.vmem %s0, %s330
        %p332 = pneg %p51
        %p333 = pneg %p48
        %s334 = sand.u32 %s64, 1
        %s335 = sand.u32 %s64, 1
        %s336 = smul.addr %s335, 64
        %s337 = scalar_lea.vmem [#allocation3], %s336
        %p338 = pneg %p77
        %p339 = pneg %p74
        %s340 = smul.u32 4, %s23
        %p341 = scmp.lt.s32.totalorder %s340, 15
        %s342 = scalar_select %p341, %s340, 15
        %s343 = scalar_lea.vmem %s2, %s342
        %p344 = pneg %p103
        %p345 = pneg %p100
        %s346 = smul.u32 64, %s23
        %p347 = scmp.lt.s32.totalorder %s346, 255
        %s348 = scalar_select %p347, %s346, 255
        %s349 = smul.addr %s348, 4
        %s350 = scalar_lea.vmem %s3, %s349
        %p351 = pneg %p129
        %p352 = pneg %p126
        %p353 = pneg %p150
        %p354 = pneg %p147
        %p355 = pneg %p171
        %p356 = pneg %p168
        %p357 = pneg %p192
        %p358 = pneg %p189
        %p359 = pneg %p218
        %p360 = pneg %p215
        %s361 = smul.u32 2, %s22
        %p362 = scmp.lt.s32.totalorder %s361, 1
        %s363 = scalar_select %p362, %s361, 1
        %s364 = smul.addr %s363, 4
        %s365 = scalar_lea.vmem %s7, %s364
        %s366 = smul.u32 2, %s22
        %p367 = scmp.lt.s32.totalorder %s366, 1
        %s368 = scalar_select %p367, %s366, 1
        %s369 = smul.addr %s368, 4
        %s370 = scalar_lea.vmem %s0, %s369
        %s371 = smul.u32 2, %s22
        %s372 = smul.u32 4, %s23
        %s373 = smul.u32 4, %s23
        %p374 = scmp.lt.s32.totalorder %s373, 15
        %s375 = scalar_select %p374, %s373, 15
        %s376 = scalar_lea.vmem %s2, %s375
        %s377 = smul.u32 4, %s23
        %s378 = smul.u32 64, %s23
        %p379 = scmp.lt.s32.totalorder %s378, 255
        %s380 = scalar_select %p379, %s378, 255
        %s381 = smul.addr %s380, 4
        %s382 = scalar_lea.vmem %s3, %s381
        %s383 = smul.u32 64, %s23
        %s384 = smul.u32 2, %s22
        %p385 = scmp.lt.s32.totalorder %s384, 1
        %s386 = scalar_select %p385, %s384, 1
        %s387 = smul.addr %s386, 4
        %s388 = scalar_lea.vmem %s7, %s387
        %s389 = smul.u32 2, %s22
        %p391 = scmp.eq.s32.totalorder %s23, 0
        // Predicated region
        $region72: #{transformer_forward.14} parent=66 // pred_check
          %p392 = pneg %p391
        $region73: #{transformer_forward.14} parent=66 // pred_check_branch
          %394 = sbr.rel (%p392) target = $region75
        $region74: #{transformer_forward.14} parent=66 // pred_region
          %vm395 = vcmask 261120
          %396 = vst.msk [vmem:[#allocation2] sm:$0xff] %vm395, 0.0
          %397 = vst.msk [vmem:[#allocation2 + $0x8] sm:$0xff] %vm395, 0.0
        $region75: #{transformer_forward.14} parent=66 // pred_fallthru
          _
        %v398 = vld [vmem:[%s370] sm:$0xf]
        %v399 = vld [vmem:[%s370 + $0x4] sm:$0xf]
        %v400 = vld [vmem:[%s323] sm:$0xff]
        %v401 = vld [vmem:[%s323 + $0x8] sm:$0xff]
        %v402 = vld [vmem:[%s323 + $0x10] sm:$0xff]
        %v403 = vld [vmem:[%s323 + $0x18] sm:$0xff]
        %v404 = vld [vmem:[%s323 + $0x20] sm:$0xff]
        %v405 = vld [vmem:[%s323 + $0x28] sm:$0xff]
        %v406 = vld [vmem:[%s323 + $0x30] sm:$0xff]
        %v407 = vld [vmem:[%s323 + $0x38] sm:$0xff]
        %v408 = vld [vmem:[%s376] sm:$0xf]
        %v410 = vlaneseq
        %v411 = vshrl.u32 %v410, 7
        %v412 = vsub.s32 0, %v411
        %v413 = vrot.slane %v408, %v412
        %v414 = vlaneseq
        %v415 = vshrl.u32 %v414, 7
        %v416 = vsub.s32 1, %v415
        %v417 = vrot.slane %v408, %v416
        %v418 = vlaneseq
        %v419 = vshrl.u32 %v418, 7
        %v420 = vsub.s32 2, %v419
        %v421 = vrot.slane %v408, %v420
        %v422 = vlaneseq
        %v423 = vshrl.u32 %v422, 7
        %v424 = vsub.s32 3, %v423
        %v425 = vrot.slane %v408, %v424
        %v432 = vunpack.c.l.b16 %v398
        %v433 = vunpack.c.l.b16 %v399
        %v434 = vpack.c.b16 %v433, %v432
        %v443 = vunpack.c.l.b16 %v400
        %v444 = vunpack.c.h.b16 %v400
        %v445 = vunpack.c.l.b16 %v401
        %v446 = vunpack.c.h.b16 %v401
        %v447 = vunpack.c.l.b16 %v402
        %v448 = vunpack.c.h.b16 %v402
        %v449 = vunpack.c.l.b16 %v403
        %v450 = vunpack.c.h.b16 %v403
        %v451 = vunpack.c.l.b16 %v404
        %v452 = vunpack.c.h.b16 %v404
        %v453 = vunpack.c.l.b16 %v405
        %v454 = vunpack.c.h.b16 %v405
        %v455 = vunpack.c.l.b16 %v406
        %v456 = vunpack.c.h.b16 %v406
        %v457 = vunpack.c.l.b16 %v407
        %v458 = vunpack.c.h.b16 %v407
        %v459 = vpack.c.b16 %v447, %v443
        %v460 = vpack.c.b16 %v448, %v444
        %v461 = vpack.c.b16 %v449, %v445
        %v462 = vpack.c.b16 %v450, %v446
        %v463 = vpack.c.b16 %v455, %v451
        %v464 = vpack.c.b16 %v456, %v452
        %v465 = vpack.c.b16 %v457, %v453
        %v466 = vpack.c.b16 %v458, %v454
        %vm475 = vcmask 261120
        %v477 = vsel %vm475, %v434, 0
        %479 = vmatprep.subr.bf16.mxu0 0
        %480 = vmatpush1.bf16.msra.mxu0 0
        %481 = vmatprep.subr.bf16.mxu0 0
        %482 = vmatpush1.bf16.msra.mxu0 0
        %483 = vmatprep.subr.bf16.mxu0 0
        %484 = vmatpush1.bf16.msra.mxu0 0
        %485 = vmatprep.subr.bf16.mxu0 0
        %486 = vmatpush1.bf16.msra.mxu0 0
        %487 = vmatprep.subr.bf16.mxu0 0
        %488 = vmatpush1.bf16.msra.mxu0 0
        %489 = vmatprep.subr.bf16.mxu0 0
        %490 = vmatpush1.bf16.msra.mxu0 0
        %491 = vmatprep.subr.bf16.mxu0 %v464
        %492 = vmatpush1.bf16.msra.mxu0 %v463
        %493 = vmatprep.subr.bf16.mxu0 %v460
        %494 = vmatpush1.bf16.msra.mxu0 %v459
        %495 = vmatprep.subr.bf16.mxu0 0
        %496 = vmatpush2.bf16.msra.mxu0 0
        %497 = vmatprep.subr.bf16.mxu0 0
        %498 = vmatpush2.bf16.msra.mxu0 0
        %499 = vmatprep.subr.bf16.mxu0 0
        %500 = vmatpush2.bf16.msra.mxu0 0
        %501 = vmatprep.subr.bf16.mxu0 0
        %502 = vmatpush2.bf16.msra.mxu0 0
        %503 = vmatprep.subr.bf16.mxu0 0
        %504 = vmatpush2.bf16.msra.mxu0 0
        %505 = vmatprep.subr.bf16.mxu0 0
        %506 = vmatpush2.bf16.msra.mxu0 0
        %507 = vmatprep.subr.bf16.mxu0 0
        %508 = vmatpush2.bf16.msra.mxu0 0
        %509 = vmatprep.subr.bf16.mxu0 0
        %510 = vmatpush2.bf16.msra.mxu0 0
        %511 = vmatprep.mubr.bf16.mxu0 0
        %512 = vmatmul.mubr.bf16.gmra.mxu0 %v477
        %v513 = vpop.f32.mrf.mxu0
        %v514 = vadd.f32 %v413, %v513
        %v515 = vpop.f32.mrf.mxu0
        %v516 = vadd.f32 %v417, %v515
        %v517 = vpop.f32.mrf.mxu0
        %v518 = vadd.f32 %v413, %v517
        %v519 = vpop.f32.mrf.mxu0
        %v520 = vadd.f32 %v417, %v519
        %521 = vdwg.mxu0
        %522 = vmatprep.subr.bf16.mxu0 0
        %523 = vmatpush1.bf16.msra.mxu0 0
        %524 = vmatprep.subr.bf16.mxu0 0
        %525 = vmatpush1.bf16.msra.mxu0 0
        %526 = vmatprep.subr.bf16.mxu0 0
        %527 = vmatpush1.bf16.msra.mxu0 0
        %528 = vmatprep.subr.bf16.mxu0 0
        %529 = vmatpush1.bf16.msra.mxu0 0
        %530 = vmatprep.subr.bf16.mxu0 0
        %531 = vmatpush1.bf16.msra.mxu0 0
        %532 = vmatprep.subr.bf16.mxu0 0
        %533 = vmatpush1.bf16.msra.mxu0 0
        %534 = vmatprep.subr.bf16.mxu0 %v466
        %535 = vmatpush1.bf16.msra.mxu0 %v465
        %536 = vmatprep.subr.bf16.mxu0 %v462
        %537 = vmatpush1.bf16.msra.mxu0 %v461
        %538 = vmatprep.subr.bf16.mxu0 0
        %539 = vmatpush2.bf16.msra.mxu0 0
        %540 = vmatprep.subr.bf16.mxu0 0
        %541 = vmatpush2.bf16.msra.mxu0 0
        %542 = vmatprep.subr.bf16.mxu0 0
        %543 = vmatpush2.bf16.msra.mxu0 0
        %544 = vmatprep.subr.bf16.mxu0 0
        %545 = vmatpush2.bf16.msra.mxu0 0
        %546 = vmatprep.subr.bf16.mxu0 0
        %547 = vmatpush2.bf16.msra.mxu0 0
        %548 = vmatprep.subr.bf16.mxu0 0
        %549 = vmatpush2.bf16.msra.mxu0 0
        %550 = vmatprep.subr.bf16.mxu0 0
        %551 = vmatpush2.bf16.msra.mxu0 0
        %552 = vmatprep.subr.bf16.mxu0 0
        %553 = vmatpush2.bf16.msra.mxu0 0
        %554 = vmatprep.mubr.bf16.mxu0 0
        %555 = vmatmul.mubr.bf16.gmra.mxu0 %v477
        %v556 = vpop.f32.mrf.mxu0
        %v557 = vadd.f32 %v421, %v556
        %v558 = vpop.f32.mrf.mxu0
        %v559 = vadd.f32 %v425, %v558
        %v560 = vpop.f32.mrf.mxu0
        %v561 = vadd.f32 %v421, %v560
        %v562 = vpop.f32.mrf.mxu0
        %v563 = vadd.f32 %v425, %v562
        %564 = vdwg.mxu0
        %v565 = vmax.f32 %v514, 0.0
        %v566 = vmax.f32 %v516, 0.0
        %v567 = vmax.f32 %v557, 0.0
        %v568 = vmax.f32 %v559, 0.0
        %v569 = vmax.f32 %v518, 0.0
        %v570 = vmax.f32 %v520, 0.0
        %v571 = vmax.f32 %v561, 0.0
        %v572 = vmax.f32 %v563, 0.0
        %v573 = vld [vmem:[#allocation2] sm:$0xff]
        %v574 = vld [vmem:[#allocation2 + $0x8] sm:$0xff]
        %v575 = vpack.c.bf16 %v569, %v565
        %v576 = vpack.c.bf16 %v570, %v566
        %v577 = vpack.c.bf16 %v571, %v567
        %v578 = vpack.c.bf16 %v572, %v568
        %v579 = vld [vmem:[%s382] sm:$0xf]
        %v580 = vld [vmem:[%s382 + $0x4] sm:$0xf]
        %v581 = vld [vmem:[%s382 + $0x8] sm:$0xf]
        %v582 = vld [vmem:[%s382 + $0xc] sm:$0xf]
        %v583 = vld [vmem:[%s382 + $0x10] sm:$0xf]
        %v584 = vld [vmem:[%s382 + $0x14] sm:$0xf]
        %v585 = vld [vmem:[%s382 + $0x18] sm:$0xf]
        %v586 = vld [vmem:[%s382 + $0x1c] sm:$0xf]
        %v587 = vld [vmem:[%s382 + $0x20] sm:$0xf]
        %v588 = vld [vmem:[%s382 + $0x24] sm:$0xf]
        %v589 = vld [vmem:[%s382 + $0x28] sm:$0xf]
        %v590 = vld [vmem:[%s382 + $0x2c] sm:$0xf]
        %v591 = vld [vmem:[%s382 + $0x30] sm:$0xf]
        %v592 = vld [vmem:[%s382 + $0x34] sm:$0xf]
        %v593 = vld [vmem:[%s382 + $0x38] sm:$0xf]
        %v594 = vld [vmem:[%s382 + $0x3c] sm:$0xf]
        %v595 = vld [vmem:[%s382 + $0x40] sm:$0xf]
        %v596 = vld [vmem:[%s382 + $0x44] sm:$0xf]
        %v597 = vld [vmem:[%s382 + $0x48] sm:$0xf]
        %v598 = vld [vmem:[%s382 + $0x4c] sm:$0xf]
        %v599 = vld [vmem:[%s382 + $0x50] sm:$0xf]
        %v600 = vld [vmem:[%s382 + $0x54] sm:$0xf]
        %v601 = vld [vmem:[%s382 + $0x58] sm:$0xf]
        %v602 = vld [vmem:[%s382 + $0x5c] sm:$0xf]
        %v603 = vld [vmem:[%s382 + $0x60] sm:$0xf]
        %v604 = vld [vmem:[%s382 + $0x64] sm:$0xf]
        %v605 = vld [vmem:[%s382 + $0x68] sm:$0xf]
        %v606 = vld [vmem:[%s382 + $0x6c] sm:$0xf]
        %v607 = vld [vmem:[%s382 + $0x70] sm:$0xf]
        %v608 = vld [vmem:[%s382 + $0x74] sm:$0xf]
        %v609 = vld [vmem:[%s382 + $0x78] sm:$0xf]
        %v610 = vld [vmem:[%s382 + $0x7c] sm:$0xf]
        %v611 = vld [vmem:[%s382 + $0x80] sm:$0xf]
        %v612 = vld [vmem:[%s382 + $0x84] sm:$0xf]
        %v613 = vld [vmem:[%s382 + $0x88] sm:$0xf]
        %v614 = vld [vmem:[%s382 + $0x8c] sm:$0xf]
        %v615 = vld [vmem:[%s382 + $0x90] sm:$0xf]
        %v616 = vld [vmem:[%s382 + $0x94] sm:$0xf]
        %v617 = vld [vmem:[%s382 + $0x98] sm:$0xf]
        %v618 = vld [vmem:[%s382 + $0x9c] sm:$0xf]
        %v619 = vld [vmem:[%s382 + $0xa0] sm:$0xf]
        %v620 = vld [vmem:[%s382 + $0xa4] sm:$0xf]
        %v621 = vld [vmem:[%s382 + $0xa8] sm:$0xf]
        %v622 = vld [vmem:[%s382 + $0xac] sm:$0xf]
        %v623 = vld [vmem:[%s382 + $0xb0] sm:$0xf]
        %v624 = vld [vmem:[%s382 + $0xb4] sm:$0xf]
        %v625 = vld [vmem:[%s382 + $0xb8] sm:$0xf]
        %v626 = vld [vmem:[%s382 + $0xbc] sm:$0xf]
        %v627 = vld [vmem:[%s382 + $0xc0] sm:$0xf]
        %v628 = vld [vmem:[%s382 + $0xc4] sm:$0xf]
        %v629 = vld [vmem:[%s382 + $0xc8] sm:$0xf]
        %v630 = vld [vmem:[%s382 + $0xcc] sm:$0xf]
        %v631 = vld [vmem:[%s382 + $0xd0] sm:$0xf]
        %v632 = vld [vmem:[%s382 + $0xd4] sm:$0xf]
        %v633 = vld [vmem:[%s382 + $0xd8] sm:$0xf]
        %v634 = vld [vmem:[%s382 + $0xdc] sm:$0xf]
        %v635 = vld [vmem:[%s382 + $0xe0] sm:$0xf]
        %v636 = vld [vmem:[%s382 + $0xe4] sm:$0xf]
        %v637 = vld [vmem:[%s382 + $0xe8] sm:$0xf]
        %v638 = vld [vmem:[%s382 + $0xec] sm:$0xf]
        %v639 = vld [vmem:[%s382 + $0xf0] sm:$0xf]
        %v640 = vld [vmem:[%s382 + $0xf4] sm:$0xf]
        %v641 = vld [vmem:[%s382 + $0xf8] sm:$0xf]
        %v642 = vld [vmem:[%s382 + $0xfc] sm:$0xf]
        %v707 = vunpack.c.l.b16 %v579
        %v708 = vunpack.c.l.b16 %v580
        %v709 = vunpack.c.l.b16 %v581
        %v710 = vunpack.c.l.b16 %v582
        %v711 = vunpack.c.l.b16 %v583
        %v712 = vunpack.c.l.b16 %v584
        %v713 = vunpack.c.l.b16 %v585
        %v714 = vunpack.c.l.b16 %v586
        %v715 = vunpack.c.l.b16 %v587
        %v716 = vunpack.c.l.b16 %v588
        %v717 = vunpack.c.l.b16 %v589
        %v718 = vunpack.c.l.b16 %v590
        %v719 = vunpack.c.l.b16 %v591
        %v720 = vunpack.c.l.b16 %v592
        %v721 = vunpack.c.l.b16 %v593
        %v722 = vunpack.c.l.b16 %v594
        %v723 = vunpack.c.l.b16 %v595
        %v724 = vunpack.c.l.b16 %v596
        %v725 = vunpack.c.l.b16 %v597
        %v726 = vunpack.c.l.b16 %v598
        %v727 = vunpack.c.l.b16 %v599
        %v728 = vunpack.c.l.b16 %v600
        %v729 = vunpack.c.l.b16 %v601
        %v730 = vunpack.c.l.b16 %v602
        %v731 = vunpack.c.l.b16 %v603
        %v732 = vunpack.c.l.b16 %v604
        %v733 = vunpack.c.l.b16 %v605
        %v734 = vunpack.c.l.b16 %v606
        %v735 = vunpack.c.l.b16 %v607
        %v736 = vunpack.c.l.b16 %v608
        %v737 = vunpack.c.l.b16 %v609
        %v738 = vunpack.c.l.b16 %v610
        %v739 = vunpack.c.l.b16 %v611
        %v740 = vunpack.c.l.b16 %v612
        %v741 = vunpack.c.l.b16 %v613
        %v742 = vunpack.c.l.b16 %v614
        %v743 = vunpack.c.l.b16 %v615
        %v744 = vunpack.c.l.b16 %v616
        %v745 = vunpack.c.l.b16 %v617
        %v746 = vunpack.c.l.b16 %v618
        %v747 = vunpack.c.l.b16 %v619
        %v748 = vunpack.c.l.b16 %v620
        %v749 = vunpack.c.l.b16 %v621
        %v750 = vunpack.c.l.b16 %v622
        %v751 = vunpack.c.l.b16 %v623
        %v752 = vunpack.c.l.b16 %v624
        %v753 = vunpack.c.l.b16 %v625
        %v754 = vunpack.c.l.b16 %v626
        %v755 = vunpack.c.l.b16 %v627
        %v756 = vunpack.c.l.b16 %v628
        %v757 = vunpack.c.l.b16 %v629
        %v758 = vunpack.c.l.b16 %v630
        %v759 = vunpack.c.l.b16 %v631
        %v760 = vunpack.c.l.b16 %v632
        %v761 = vunpack.c.l.b16 %v633
        %v762 = vunpack.c.l.b16 %v634
        %v763 = vunpack.c.l.b16 %v635
        %v764 = vunpack.c.l.b16 %v636
        %v765 = vunpack.c.l.b16 %v637
        %v766 = vunpack.c.l.b16 %v638
        %v767 = vunpack.c.l.b16 %v639
        %v768 = vunpack.c.l.b16 %v640
        %v769 = vunpack.c.l.b16 %v641
        %v770 = vunpack.c.l.b16 %v642
        %v771 = vpack.c.b16 %v708, %v707
        %v772 = vpack.c.b16 %v710, %v709
        %v773 = vpack.c.b16 %v712, %v711
        %v774 = vpack.c.b16 %v714, %v713
        %v775 = vpack.c.b16 %v716, %v715
        %v776 = vpack.c.b16 %v718, %v717
        %v777 = vpack.c.b16 %v720, %v719
        %v778 = vpack.c.b16 %v722, %v721
        %v779 = vpack.c.b16 %v724, %v723
        %v780 = vpack.c.b16 %v726, %v725
        %v781 = vpack.c.b16 %v728, %v727
        %v782 = vpack.c.b16 %v730, %v729
        %v783 = vpack.c.b16 %v732, %v731
        %v784 = vpack.c.b16 %v734, %v733
        %v785 = vpack.c.b16 %v736, %v735
        %v786 = vpack.c.b16 %v738, %v737
        %v787 = vpack.c.b16 %v740, %v739
        %v788 = vpack.c.b16 %v742, %v741
        %v789 = vpack.c.b16 %v744, %v743
        %v790 = vpack.c.b16 %v746, %v745
        %v791 = vpack.c.b16 %v748, %v747
        %v792 = vpack.c.b16 %v750, %v749
        %v793 = vpack.c.b16 %v752, %v751
        %v794 = vpack.c.b16 %v754, %v753
        %v795 = vpack.c.b16 %v756, %v755
        %v796 = vpack.c.b16 %v758, %v757
        %v797 = vpack.c.b16 %v760, %v759
        %v798 = vpack.c.b16 %v762, %v761
        %v799 = vpack.c.b16 %v764, %v763
        %v800 = vpack.c.b16 %v766, %v765
        %v801 = vpack.c.b16 %v768, %v767
        %v802 = vpack.c.b16 %v770, %v769
        %835 = vmatprep.subr.bf16.mxu0 0
        %836 = vmatpush1.bf16.msra.mxu0 %v778
        %837 = vmatprep.subr.bf16.mxu0 0
        %838 = vmatpush1.bf16.msra.mxu0 %v777
        %839 = vmatprep.subr.bf16.mxu0 0
        %840 = vmatpush1.bf16.msra.mxu0 %v776
        %841 = vmatprep.subr.bf16.mxu0 0
        %842 = vmatpush1.bf16.msra.mxu0 %v775
        %843 = vmatprep.subr.bf16.mxu0 0
        %844 = vmatpush1.bf16.msra.mxu0 %v774
        %845 = vmatprep.subr.bf16.mxu0 0
        %846 = vmatpush1.bf16.msra.mxu0 %v773
        %847 = vmatprep.subr.bf16.mxu0 0
        %848 = vmatpush1.bf16.msra.mxu0 %v772
        %849 = vmatprep.subr.bf16.mxu0 0
        %850 = vmatpush1.bf16.msra.mxu0 %v771
        %851 = vmatprep.subr.bf16.mxu0 0
        %852 = vmatpush2.bf16.msra.mxu0 %v786
        %853 = vmatprep.subr.bf16.mxu0 0
        %854 = vmatpush2.bf16.msra.mxu0 %v785
        %855 = vmatprep.subr.bf16.mxu0 0
        %856 = vmatpush2.bf16.msra.mxu0 %v784
        %857 = vmatprep.subr.bf16.mxu0 0
        %858 = vmatpush2.bf16.msra.mxu0 %v783
        %859 = vmatprep.subr.bf16.mxu0 0
        %860 = vmatpush2.bf16.msra.mxu0 %v782
        %861 = vmatprep.subr.bf16.mxu0 0
        %862 = vmatpush2.bf16.msra.mxu0 %v781
        %863 = vmatprep.subr.bf16.mxu0 0
        %864 = vmatpush2.bf16.msra.mxu0 %v780
        %865 = vmatprep.subr.bf16.mxu0 0
        %866 = vmatpush2.bf16.msra.mxu0 %v779
        %867 = vmatprep.mubr.bf16.mxu0 %v576
        %868 = vmatmul.mubr.bf16.gmra.mxu0 %v575
        %v869 = vpop.f32.mrf.mxu0
        %v870 = vadd.f32 0.0, %v869
        %v871 = vpop.f32.mrf.mxu0
        %v872 = vpop.f32.mrf.mxu0
        %v873 = vadd.f32 0.0, %v872
        %v874 = vpop.f32.mrf.mxu0
        %875 = vdwg.mxu0
        %876 = vmatprep.subr.bf16.mxu0 0
        %877 = vmatpush1.bf16.msra.mxu0 %v794
        %878 = vmatprep.subr.bf16.mxu0 0
        %879 = vmatpush1.bf16.msra.mxu0 %v793
        %880 = vmatprep.subr.bf16.mxu0 0
        %881 = vmatpush1.bf16.msra.mxu0 %v792
        %882 = vmatprep.subr.bf16.mxu0 0
        %883 = vmatpush1.bf16.msra.mxu0 %v791
        %884 = vmatprep.subr.bf16.mxu0 0
        %885 = vmatpush1.bf16.msra.mxu0 %v790
        %886 = vmatprep.subr.bf16.mxu0 0
        %887 = vmatpush1.bf16.msra.mxu0 %v789
        %888 = vmatprep.subr.bf16.mxu0 0
        %889 = vmatpush1.bf16.msra.mxu0 %v788
        %890 = vmatprep.subr.bf16.mxu0 0
        %891 = vmatpush1.bf16.msra.mxu0 %v787
        %892 = vmatprep.subr.bf16.mxu0 0
        %893 = vmatpush2.bf16.msra.mxu0 %v802
        %894 = vmatprep.subr.bf16.mxu0 0
        %895 = vmatpush2.bf16.msra.mxu0 %v801
        %896 = vmatprep.subr.bf16.mxu0 0
        %897 = vmatpush2.bf16.msra.mxu0 %v800
        %898 = vmatprep.subr.bf16.mxu0 0
        %899 = vmatpush2.bf16.msra.mxu0 %v799
        %900 = vmatprep.subr.bf16.mxu0 0
        %901 = vmatpush2.bf16.msra.mxu0 %v798
        %902 = vmatprep.subr.bf16.mxu0 0
        %903 = vmatpush2.bf16.msra.mxu0 %v797
        %904 = vmatprep.subr.bf16.mxu0 0
        %905 = vmatpush2.bf16.msra.mxu0 %v796
        %906 = vmatprep.subr.bf16.mxu0 0
        %907 = vmatpush2.bf16.msra.mxu0 %v795
        %908 = vmatprep.mubr.bf16.mxu0 %v578
        %909 = vmatmul.mubr.bf16.gmra.mxu0 %v577
        %v910 = vpop.f32.mrf.mxu0
        %v911 = vadd.f32 %v870, %v910
        %v912 = vpop.f32.mrf.mxu0
        %v913 = vpop.f32.mrf.mxu0
        %v914 = vadd.f32 %v873, %v913
        %v915 = vpop.f32.mrf.mxu0
        %916 = vdwg.mxu0
        %v917 = vadd.f32 %v573, %v911
        %v918 = vadd.f32 %v574, %v914
        %919 = vst.msk [vmem:[#allocation2] sm:$0xff] %vm475, %v917
        %920 = vst.msk [vmem:[#allocation2 + $0x8] sm:$0xff] %vm475, %v918
        %p921 = scmp.eq.s32.totalorder %s23, 3
        // Predicated region
        $region76: #{transformer_forward.14} parent=66 // pred_check
          %p922 = pneg %p921
        $region77: #{transformer_forward.14} parent=66 // pred_check_branch
          %924 = sbr.rel (%p922) target = $region79
        $region78: #{transformer_forward.14} parent=66 // pred_region
          %v925 = vld [vmem:[#allocation2] sm:$0xff]
          %v926 = vld [vmem:[#allocation2 + $0x8] sm:$0xff]
          %v927 = vld [vmem:[%s4] sm:$0x1]
          %v929 = vlaneseq
          %v930 = vshrl.u32 %v929, 7
          %v931 = vsub.s32 0, %v930
          %v932 = vrot.slane %v927, %v931
          %v934 = vadd.f32 %v925, %v932
          %v935 = vadd.f32 %v926, %v932
          %v936 = vld [vmem:[%s370] sm:$0xf]
          %v937 = vld [vmem:[%s370 + $0x4] sm:$0xf]
          %v938 = vunpack.c.l.bf16 %v936
          %v939 = vunpack.c.l.bf16 %v937
          %v940 = vadd.f32 %v934, %v938
          %v941 = vadd.f32 %v935, %v939
          %v942 = vsel %vm475, %v940, 0.0
          %943 = vadd.xlane.f32.xlu0 %v942
          %v944 = vpop.xlane.xlu0 %943
          %v945 = vsel %vm475, %v941, 0.0
          %946 = vadd.xlane.f32.xlu0 %v945
          %v947 = vpop.xlane.xlu0 %946
          %v948 = vrcp.pop 32.0
          %v949 = vmul.f32 %v944, %v948
          %v950 = vmul.f32 %v947, %v948
          %v951 = vsub.f32 %v940, %v949
          %v952 = vsub.f32 %v941, %v950
          %v953 = vmul.f32 %v951, %v951
          %v954 = vmul.f32 %v952, %v952
          %v955 = vsel %vm475, %v953, 0.0
          %956 = vadd.xlane.f32.xlu0 %v955
          %v957 = vpop.xlane.xlu0 %956
          %v958 = vsel %vm475, %v954, 0.0
          %959 = vadd.xlane.f32.xlu0 %v958
          %v960 = vpop.xlane.xlu0 %959
          %v961 = vmul.f32 %v957, %v948
          %v962 = vmul.f32 %v960, %v948
          %v963 = vadd.f32 %v961, 1e-05
          %v964 = vadd.f32 %v962, 1e-05
          %v965 = vrsqrt.pop %v963
          %v966 = vrsqrt.pop %v964
          %v967 = vmul.f32 %v951, %v965
          %v968 = vmul.f32 %v952, %v966
          %v969 = vld [vmem:[%s5] sm:$0x1]
          %v971 = vlaneseq
          %v972 = vshrl.u32 %v971, 7
          %v973 = vsub.s32 0, %v972
          %v974 = vrot.slane %v969, %v973
          %v976 = vmul.f32 %v967, %v974
          %v977 = vmul.f32 %v968, %v974
          %v978 = vld [vmem:[%s6] sm:$0x1]
          %v980 = vlaneseq
          %v981 = vshrl.u32 %v980, 7
          %v982 = vsub.s32 0, %v981
          %v983 = vrot.slane %v978, %v982
          %v985 = vadd.f32 %v976, %v983
          %v986 = vadd.f32 %v977, %v983
          %v987 = vpack.c.bf16 %v986, %v985
          %v989 = vunpack.c.l.b16 %v987
          %v990 = vunpack.c.h.b16 %v987
          %v991 = vpack.c.b16 %v989, %v989
          %v992 = vpack.c.b16 %v990, %v990
          %vm995 = vcmask 257024
          %996 = vst.msk [vmem:[%s388] sm:$0xf] %vm995, %v991
          %997 = vst.msk [vmem:[%s388 + $0x4] sm:$0xf] %vm995, %v992
        $region79: #{transformer_forward.14} parent=66 // pred_fallthru
          _
        %s998 = smul.u32 2, %s22
        %p999 = scmp.lt.s32.totalorder %s998, 1
        %s1000 = scalar_select %p999, %s998, 1
        %s1001 = smul.addr %s1000, 4
        %s1002 = scalar_lea.vmem %s7, %s1001
        // Predicated region
        $region80: #{transformer_forward.14} parent=66 // pred_check
          %p1003 = pneg %p215
        $region81: #{transformer_forward.14} parent=66 // pred_check_branch
          %1005 = sbr.rel (%p1003) target = $region83
        $region82: #{transformer_forward.14} parent=66 // pred_region
          %s1006 = smul.u32 2, %s22
        $region83: #{transformer_forward.14} parent=66 // pred_fallthru
          _
        // Predicated region
        $region84: #{transformer_forward.14} parent=66 // pred_check
          %p1007 = pneg %p215
        $region85: #{transformer_forward.14} parent=66 // pred_check_branch
          %1009 = sbr.rel (%p1007) target = $region87
        $region86: #{transformer_forward.14} parent=66 // pred_region
          %s1010 = smul.u32 2, %s22
          %p1011 = scmp.lt.s32.totalorder %s1010, 1
          %s1012 = scalar_select %p1011, %s1010, 1
          %s1013 = smul.addr %s1012, 4
          %s1014 = scalar_lea.vmem %s7, %s1013
        $region87: #{transformer_forward.14} parent=66 // pred_fallthru
          _
      $region67: #{transformer_forward.14} parent=5 // pred_fallthru
        _
      %p1015 = scmp.le.s32.totalorder 2, %s13
      // Predicated region
      $region88: #{transformer_forward.14} parent=5 // pred_check
        %p1016 = pneg %p1015
      $region89: #{transformer_forward.14} parent=5 // pred_check_branch
        %1018 = sbr.rel (%p1016) target = $region91
      $region90: #{transformer_forward.14} parent=5 // pred_region
        %s1019 = ssub.s32 %s13, 2
      $region91: #{transformer_forward.14} parent=5 // pred_fallthru
        _
    $region6: #{transformer_forward.14} parent=1 // loop_footer
      %s17 = sadd.s32 1, %s13
    $region7: #{transformer_forward.14} parent=1 // loop_footer_branch
      %12 = sbr.rel target = $region3
    $region8: #{transformer_forward.14} parent=1 // loop_exit
      _

</llo_original>
